<compile_context>
chip_gen: v5e
topology: v5e:2x2
jax: 0.10.0
libtpu: 0.0.40
codegen_flags: <defaults>
</compile_context>

<pallas_src>
import functools

import jax
import jax.numpy as jnp
from jax.experimental import pallas as pl
from jax.experimental.pallas import tpu as pltpu


def _default_vmem_limit():
    """Generation-aware scoped-VMEM limit: ~3/4 of physical, capped at 96 MiB."""
    cap = 128 * 1024 * 1024
    try:
        cap = int(getattr(pltpu.get_tpu_info(), "vmem_capacity_bytes", cap))
    except Exception:
        pass
    return int(max(32 * 1024 * 1024, min(cap * 3 // 4, 96 * 1024 * 1024)))


_VMEM_LIMIT = _default_vmem_limit()


# ----------------------------------------------------------------------------
# Pallas kernels
# ----------------------------------------------------------------------------
def _conv_s2_kernel(*refs, ws, length, act, has_bias, want_stats):
    """Fused k=4/s=2/p=1 conv (space-to-depth'd to k=2/s=1), one sample per step.

    refs (in order):
      x:    (1, s_in, K)  bf16  padded + s2d + spatially-flattened sample slab
      w:    (4, K, Cout)  bf16  the four 2x2 taps, axis 0 ordered (di, dj)
      b:    (1, Cout)     f32   [optional]
      mask: (length, 1)   f32   [optional] 1.0 on valid output rows (BN stats)
      y:    (1, length, Cout)   output; rows r = oh*ws + ow, the ow == ws-1
                                column is junk and is dropped by the caller
      sum/sumsq: (1, 1, Cout) f32  [optional] masked per-sample BN partials
    """
    i = 0
    x_ref = refs[i]; i += 1
    w_ref = refs[i]; i += 1
    b_ref = None
    if has_bias:
        b_ref = refs[i]; i += 1
    m_ref = None
    if want_stats:
        m_ref = refs[i]; i += 1
    o_ref = refs[i]; i += 1
    sum_ref = sq_ref = None
    if want_stats:
        sum_ref, sq_ref = refs[i], refs[i + 1]

    acc = None
    # Shift offsets for the 2x2 taps, same (di, dj) order as w's leading axis.
    for t, off in enumerate((0, 1, ws, ws + 1)):
        xt = x_ref[0, off:off + length, :]                       # (length, K) bf16
        prod = jnp.dot(xt, w_ref[t], preferred_element_type=jnp.float32)
        acc = prod if acc is None else acc + prod
    if b_ref is not None:
        acc = acc + b_ref[...]

    if want_stats:
        m = m_ref[...]                                           # (length, 1)
        sum_ref[0] = jnp.sum(acc * m, axis=0, keepdims=True)
        sq_ref[0] = jnp.sum(acc * acc * m, axis=0, keepdims=True)

    if act == "leaky":
        acc = jnp.where(acc >= 0.0, acc, 0.2 * acc)
    o_ref[0] = acc.astype(o_ref.dtype)


def fused_conv_s2(x_s2d, w, b, *, ho, wo, act, want_stats):
    """One stride-2 conv layer over per-sample space-to-depth slabs.

    x_s2d: (N, (ho+2)*(wo+1), K).  Returns y (N, ho*(wo+1), Cout) bf16 (junk
    column at ow == wo) and optionally per-sample BN partials (N, 1, Cout) f32.
    """
    N, s_in, K = x_s2d.shape
    _, K2, Cout = w.shape
    ws = wo + 1
    length = ho * ws
    assert K == K2 and s_in == (ho + 2) * ws

    in_specs = [pl.BlockSpec((1, s_in, K), lambda n: (n, 0, 0)),
                pl.BlockSpec((4, K, Cout), lambda n: (0, 0, 0))]   # resident weight
    args = [x_s2d.astype(jnp.bfloat16), w.astype(jnp.bfloat16)]
    if b is not None:
        in_specs.append(pl.BlockSpec((1, Cout), lambda n: (0, 0)))  # resident bias
        args.append(b.astype(jnp.float32))
    if want_stats:
        cols = jnp.arange(length, dtype=jnp.int32) % ws
        mask = (cols < wo).astype(jnp.float32).reshape(length, 1)
        in_specs.append(pl.BlockSpec((length, 1), lambda n: (0, 0)))
        args.append(mask)

    out_shape = jax.ShapeDtypeStruct((N, length, Cout), jnp.bfloat16)
    out_spec = pl.BlockSpec((1, length, Cout), lambda n: (n, 0, 0))
    if want_stats:
        out_shape = (out_shape,
                     jax.ShapeDtypeStruct((N, 1, Cout), jnp.float32),
                     jax.ShapeDtypeStruct((N, 1, Cout), jnp.float32))
        out_spec = (out_spec,
                    pl.BlockSpec((1, 1, Cout), lambda n: (n, 0, 0)),
                    pl.BlockSpec((1, 1, Cout), lambda n: (n, 0, 0)))

    kernel = functools.partial(_conv_s2_kernel, ws=ws, length=length, act=act,
                               has_bias=b is not None, want_stats=want_stats)
    return pl.pallas_call(
        kernel,
        out_shape=out_shape,
        grid=(N,),                          # batch axis: parallel (>=2 tiles at N>=2)
        in_specs=in_specs,
        out_specs=out_spec,
        compiler_params=pltpu.CompilerParams(
            dimension_semantics=("parallel",),
            vmem_limit_bytes=_VMEM_LIMIT),
    )(*args)


def _bn_leaky_conv3_sigmoid_kernel(y_ref, scale_ref, shift_ref, w3_ref, b3_ref,
                                   o_ref, *, h3, w3):
    """(1, H2, Ws2, C) bf16 -> BN affine -> LeakyReLU -> 4x4/s=1 conv -> sigmoid."""
    y = y_ref[0].astype(jnp.float32)                     # (H2, Ws2, C)
    y = y * scale_ref[...] + shift_ref[...]              # (1, C) broadcasts on lanes
    y = jnp.where(y >= 0.0, y, 0.2 * y)
    acc = None
    for kh in range(4):
        for kw in range(4):
            row = kh * 4 + kw
            win = y[kh:kh + h3, kw:kw + w3, :]                       # (h3, w3, C)
            term = jnp.sum(win * w3_ref[row:row + 1, :], axis=-1)    # lane reduce
            acc = term if acc is None else acc + term
    logits = acc + b3_ref[...]                           # (h3, w3) + (1, 1)
    o_ref[0] = 1.0 / (1.0 + jnp.exp(-logits))


def fused_bn_leaky_conv3_sigmoid(y2sp, scale, shift, w3s, b3, *, w_valid):
    N, H2, Ws2, C = y2sp.shape
    h3, w3 = H2 - 3, w_valid - 3
    kernel = functools.partial(_bn_leaky_conv3_sigmoid_kernel, h3=h3, w3=w3)
    return pl.pallas_call(
        kernel,
        out_shape=jax.ShapeDtypeStruct((N, h3, w3), jnp.float32),
        grid=(N,),
        in_specs=[pl.BlockSpec((1, H2, Ws2, C), lambda n: (n, 0, 0, 0)),
                  pl.BlockSpec((1, C), lambda n: (0, 0)),
                  pl.BlockSpec((1, C), lambda n: (0, 0)),
                  pl.BlockSpec((16, C), lambda n: (0, 0)),
                  pl.BlockSpec((1, 1), lambda n: (0, 0))],
        out_specs=pl.BlockSpec((1, h3, w3), lambda n: (n, 0, 0)),
        compiler_params=pltpu.CompilerParams(
            dimension_semantics=("parallel",),
            vmem_limit_bytes=_VMEM_LIMIT),
    )(y2sp, scale, shift, w3s, b3)


# ----------------------------------------------------------------------------
# Glue: pad + space-to-depth (XLA, one pass) and one-time weight repacking
# ----------------------------------------------------------------------------
def pad_s2d_flat(x):
    """(N,H,W,C) NHWC -> pad 1, 2x2 space-to-depth, flatten spatial.

    Turns the k=4/s=2/p=1 conv into a k=2/s=1 conv over 4C channels.  One trailing
    zero cell-row is appended so every shifted window in the kernel stays in bounds.
    Output: (N, (H/2 + 2) * (W/2 + 1), 4C).
    """
    N, H, W, C = x.shape
    assert H % 2 == 0 and W % 2 == 0
    hs, ws = H // 2 + 1, W // 2 + 1
    xp = jnp.pad(x, ((0, 0), (1, 1), (1, 1), (0, 0)))
    xr = xp.reshape(N, hs, 2, ws, 2, C).transpose(0, 1, 3, 2, 4, 5)
    xr = xr.reshape(N, hs * ws, 4 * C)
    return jnp.pad(xr, ((0, 0), (0, ws), (0, 0)))


def repack_s2_weight(w):
    """Torch OIHW (Cout, Cin, 4, 4) -> (4, 4*Cin, Cout) taps matching pad_s2d_flat."""
    Cout, Cin, kh, kw = w.shape
    assert kh == 4 and kw == 4
    wr = w.reshape(Cout, Cin, 2, 2, 2, 2)            # (co, c, di, p, dj, q)
    wr = wr.transpose(2, 4, 3, 5, 1, 0)              # (di, dj, p, q, c, co)
    return wr.reshape(4, 4 * Cin, Cout)


def prepare_params(raw):
    """One-time repack of torch-layout params into kernel-friendly layouts."""
    return {
        "w1": repack_s2_weight(raw["w1"]).astype(jnp.bfloat16),   # (4, 12, 64)
        "b1": raw["b1"].reshape(1, 64).astype(jnp.float32),
        "w2": repack_s2_weight(raw["w2"]).astype(jnp.bfloat16),   # (4, 256, 128)
        # raw["b2"] intentionally dropped: cancelled by BatchNorm mean subtraction.
        "w3": raw["w3"][0].transpose(1, 2, 0).reshape(16, 128).astype(jnp.float32),
        "b3": raw["b3"].reshape(1, 1).astype(jnp.float32),
        "gamma": raw["gamma"].astype(jnp.float32),
        "beta": raw["beta"].astype(jnp.float32),
    }


def discriminator_forward(x_nchw, params):
    N, Cin, H, W = x_nchw.shape
    assert Cin == 3 and H % 4 == 0 and W % 4 == 0 and H >= 16 and W >= 16
    H1, W1, H2, W2 = H // 2, W // 2, H // 4, W // 4

    # Single layout change at the boundary; activations stay NHWC/bf16 afterwards.
    x = x_nchw.transpose(0, 2, 3, 1).astype(jnp.bfloat16)

    # conv1 + LeakyReLU (fused shifted-window matmuls; no im2col slab).
    y1j = fused_conv_s2(pad_s2d_flat(x), params["w1"], params["b1"],
                        ho=H1, wo=W1, act="leaky", want_stats=False)
    y1 = y1j.reshape(N, H1, W1 + 1, 64)[:, :, :W1, :]            # drop junk column

    # conv2 (bias folded into BN) + in-kernel per-sample BatchNorm partial sums.
    y2j, s_n, q_n = fused_conv_s2(pad_s2d_flat(y1), params["w2"], None,
                                  ho=H2, wo=W2, act="none", want_stats=True)

    # BatchNorm batch statistics (training mode, biased variance): tiny XLA reduce.
    cnt = float(N * H2 * W2)
    mean = jnp.sum(s_n, axis=0)[0] / cnt                          # (128,)
    var = jnp.sum(q_n, axis=0)[0] / cnt - mean * mean
    inv_std = jax.lax.rsqrt(var + 1e-5)
    scale = (params["gamma"] * inv_std).reshape(1, 128)
    shift = (params["beta"] - mean * params["gamma"] * inv_std).reshape(1, 128)

    # BN affine + LeakyReLU + conv3 (k=4, s=1, p=0) + sigmoid, fused per sample.
    y2sp = y2j.reshape(N, H2, W2 + 1, 128)
    out = fused_bn_leaky_conv3_sigmoid(y2sp, scale, shift, params["w3"],
                                       params["b3"], w_valid=W2)  # (N, H3, W3)
    return out[:, None, :, :]                                     # NCHW, Cout = 1


# ----------------------------------------------------------------------------
# Pure-JAX f32 reference (PyTorch semantics) for a sanity check
# ----------------------------------------------------------------------------
def reference_forward(x, raw):
    def conv(x, w, b, stride, pad):
        y = jax.lax.conv_general_dilated(
            x, w, window_strides=(stride, stride),
            padding=[(pad, pad), (pad, pad)],
            dimension_numbers=("NCHW", "OIHW", "NCHW"))
        return y + b.reshape(1, -1, 1, 1)

    def leaky(v):
        return jnp.where(v >= 0, v, 0.2 * v)

    y = leaky(conv(x, raw["w1"], raw["b1"], 2, 1))
    y = conv(y, raw["w2"], raw["b2"], 2, 1)
    mean = jnp.mean(y, axis=(0, 2, 3), keepdims=True)
    var = jnp.mean((y - mean) ** 2, axis=(0, 2, 3), keepdims=True)
    y = (y - mean) * jax.lax.rsqrt(var + 1e-5)
    y = y * raw["gamma"].reshape(1, -1, 1, 1) + raw["beta"].reshape(1, -1, 1, 1)
    y = leaky(y)
    y = conv(y, raw["w3"], raw["b3"], 1, 0)
    return 1.0 / (1.0 + jnp.exp(-y))


# ----------------------------------------------------------------------------
# Main
# ----------------------------------------------------------------------------
if __name__ == "__main__":
    key = jax.random.PRNGKey(0)
    k_x, k1, k2, k3, kb1, kb2, kb3, kg, kb = jax.random.split(key, 9)

    N, Cin, H, W = 2, 3, 16, 16          # conv3 sees a 4x4 map -> 1x1 output
    x = jax.random.normal(k_x, (N, Cin, H, W), dtype=jnp.float32)

    raw = {
        "w1": 0.05 * jax.random.normal(k1, (64, 3, 4, 4), dtype=jnp.float32),
        "b1": 0.01 * jax.random.normal(kb1, (64,), dtype=jnp.float32),
        "w2": 0.05 * jax.random.normal(k2, (128, 64, 4, 4), dtype=jnp.float32),
        "b2": 0.01 * jax.random.normal(kb2, (128,), dtype=jnp.float32),
        "w3": 0.05 * jax.random.normal(k3, (1, 128, 4, 4), dtype=jnp.float32),
        "b3": 0.01 * jax.random.normal(kb3, (1,), dtype=jnp.float32),
        "gamma": 1.0 + 0.1 * jax.random.normal(kg, (128,), dtype=jnp.float32),
        "beta": 0.1 * jax.random.normal(kb, (128,), dtype=jnp.float32),
    }
    params = prepare_params(raw)

    fwd = jax.jit(discriminator_forward)
    out = jax.block_until_ready(fwd(x, params))
    ref = jax.block_until_ready(reference_forward(x, raw))

    assert out.shape == (N, 1, 1, 1), out.shape
    # Tolerance accommodates bf16 MXU inputs / bf16 intermediates vs. the f32 reference.
    assert jnp.allclose(out, ref, atol=2e-2, rtol=2e-2), (out, ref)

    print("KERNEL_OK")
</pallas_src>

<mosaic_0001>
module attributes {stable_mosaic.version = 11 : i64} {
  func.func @_conv_s2_kernel(%arg0: i32, %arg1: memref<1x90x12xbf16, #tpu.memory_space<vmem>>, %arg2: memref<4x12x64xbf16, #tpu.memory_space<vmem>>, %arg3: memref<1x64xf32, #tpu.memory_space<vmem>>, %arg4: memref<1x72x64xbf16, #tpu.memory_space<vmem>>) attributes {dimension_semantics = [#tpu.dimension_semantics<parallel>], iteration_bounds = array<i64: 2>, scalar_prefetch = 0 : i64, scratch_operands = 0 : i64, tpu.core_type = #tpu.core_type<tc>, window_params = [{transform_indices = @transform_0, window_bounds = array<i64: 1, 90, 12>}, {pipeline_mode = #tpu.pipeline_mode<synchronous>, transform_indices = @transform_1, window_bounds = array<i64: 4, 12, 64>}, {pipeline_mode = #tpu.pipeline_mode<synchronous>, transform_indices = @transform_2, window_bounds = array<i64: 1, 64>}, {transform_indices = @transform_3, window_bounds = array<i64: 1, 72, 64>}]} {
    %c0 = arith.constant 0 : index
    %c0_0 = arith.constant 0 : index
    %c0_1 = arith.constant 0 : index
    %0 = vector.load %arg1[%c0, %c0_0, %c0_1] : memref<1x90x12xbf16, #tpu.memory_space<vmem>>, vector<1x72x12xbf16>
    %1 = vector.shape_cast %0 : vector<1x72x12xbf16> to vector<72x12xbf16>
    %c0_2 = arith.constant 0 : index
    %c0_3 = arith.constant 0 : index
    %c0_4 = arith.constant 0 : index
    %2 = vector.load %arg2[%c0_2, %c0_3, %c0_4] : memref<4x12x64xbf16, #tpu.memory_space<vmem>>, vector<1x12x64xbf16>
    %3 = vector.shape_cast %2 : vector<1x12x64xbf16> to vector<12x64xbf16>
    %cst = arith.constant dense<0.000000e+00> : vector<72x64xf32>
    %4 = tpu.matmul %1, %3, %cst {dimension_numbers = #tpu.dot_dimension_numbers<[1], [0], [0], [1], [0, 0, 1, 1], [], []>} : vector<72x12xbf16>, vector<12x64xbf16>, vector<72x64xf32> -> vector<72x64xf32>
    %c0_5 = arith.constant 0 : index
    %c1 = arith.constant 1 : index
    %c0_6 = arith.constant 0 : index
    %5 = vector.load %arg1[%c0_5, %c1, %c0_6] : memref<1x90x12xbf16, #tpu.memory_space<vmem>>, vector<1x72x12xbf16>
    %6 = vector.shape_cast %5 : vector<1x72x12xbf16> to vector<72x12xbf16>
    %c1_7 = arith.constant 1 : index
    %c0_8 = arith.constant 0 : index
    %c0_9 = arith.constant 0 : index
    %7 = vector.load %arg2[%c1_7, %c0_8, %c0_9] : memref<4x12x64xbf16, #tpu.memory_space<vmem>>, vector<1x12x64xbf16>
    %8 = vector.shape_cast %7 : vector<1x12x64xbf16> to vector<12x64xbf16>
    %cst_10 = arith.constant dense<0.000000e+00> : vector<72x64xf32>
    %9 = tpu.matmul %6, %8, %cst_10 {dimension_numbers = #tpu.dot_dimension_numbers<[1], [0], [0], [1], [0, 0, 1, 1], [], []>} : vector<72x12xbf16>, vector<12x64xbf16>, vector<72x64xf32> -> vector<72x64xf32>
    %10 = arith.addf %4, %9 : vector<72x64xf32>
    %c0_11 = arith.constant 0 : index
    %c9 = arith.constant 9 : index
    %c0_12 = arith.constant 0 : index
    %11 = vector.load %arg1[%c0_11, %c9, %c0_12] : memref<1x90x12xbf16, #tpu.memory_space<vmem>>, vector<1x72x12xbf16>
    %12 = vector.shape_cast %11 : vector<1x72x12xbf16> to vector<72x12xbf16>
    %c2 = arith.constant 2 : index
    %c0_13 = arith.constant 0 : index
    %c0_14 = arith.constant 0 : index
    %13 = vector.load %arg2[%c2, %c0_13, %c0_14] : memref<4x12x64xbf16, #tpu.memory_space<vmem>>, vector<1x12x64xbf16>
    %14 = vector.shape_cast %13 : vector<1x12x64xbf16> to vector<12x64xbf16>
    %cst_15 = arith.constant dense<0.000000e+00> : vector<72x64xf32>
    %15 = tpu.matmul %12, %14, %cst_15 {dimension_numbers = #tpu.dot_dimension_numbers<[1], [0], [0], [1], [0, 0, 1, 1], [], []>} : vector<72x12xbf16>, vector<12x64xbf16>, vector<72x64xf32> -> vector<72x64xf32>
    %16 = arith.addf %10, %15 : vector<72x64xf32>
    %c0_16 = arith.constant 0 : index
    %c10 = arith.constant 10 : index
    %c0_17 = arith.constant 0 : index
    %17 = vector.load %arg1[%c0_16, %c10, %c0_17] : memref<1x90x12xbf16, #tpu.memory_space<vmem>>, vector<1x72x12xbf16>
    %18 = vector.shape_cast %17 : vector<1x72x12xbf16> to vector<72x12xbf16>
    %c3 = arith.constant 3 : index
    %c0_18 = arith.constant 0 : index
    %c0_19 = arith.constant 0 : index
    %19 = vector.load %arg2[%c3, %c0_18, %c0_19] : memref<4x12x64xbf16, #tpu.memory_space<vmem>>, vector<1x12x64xbf16>
    %20 = vector.shape_cast %19 : vector<1x12x64xbf16> to vector<12x64xbf16>
    %cst_20 = arith.constant dense<0.000000e+00> : vector<72x64xf32>
    %21 = tpu.matmul %18, %20, %cst_20 {dimension_numbers = #tpu.dot_dimension_numbers<[1], [0], [0], [1], [0, 0, 1, 1], [], []>} : vector<72x12xbf16>, vector<12x64xbf16>, vector<72x64xf32> -> vector<72x64xf32>
    %22 = arith.addf %16, %21 : vector<72x64xf32>
    %c0_21 = arith.constant 0 : index
    %c0_22 = arith.constant 0 : index
    %23 = vector.load %arg3[%c0_21, %c0_22] : memref<1x64xf32, #tpu.memory_space<vmem>>, vector<1x64xf32>
    %24 = vector.broadcast %23 : vector<1x64xf32> to vector<72x64xf32>
    %25 = arith.addf %22, %24 : vector<72x64xf32>
    %cst_23 = arith.constant 0.000000e+00 : f32
    %26 = vector.broadcast %cst_23 : f32 to vector<72x64xf32>
    %27 = arith.cmpf oge, %25, %26 : vector<72x64xf32>
    %cst_24 = arith.constant 2.000000e-01 : f32
    %28 = vector.broadcast %cst_24 : f32 to vector<72x64xf32>
    %29 = arith.mulf %28, %25 : vector<72x64xf32>
    %30 = arith.select %27, %25, %29 : vector<72x64xi1>, vector<72x64xf32>
    %31 = arith.truncf %30 : vector<72x64xf32> to vector<72x64xbf16>
    %c0_25 = arith.constant 0 : index
    %c0_26 = arith.constant 0 : index
    %c0_27 = arith.constant 0 : index
    %32 = vector.load %arg4[%c0_25, %c0_26, %c0_27] : memref<1x72x64xbf16, #tpu.memory_space<vmem>>, vector<1x72x64xbf16>
    %33 = vector.shape_cast %32 : vector<1x72x64xbf16> to vector<72x64xbf16>
    %34 = vector.shape_cast %31 : vector<72x64xbf16> to vector<1x72x64xbf16>
    tpu.vector_store %arg4[%c0_25, %c0_26, %c0_27], %34 {strides = array<i32>} : memref<1x72x64xbf16, #tpu.memory_space<vmem>>, vector<1x72x64xbf16>,
    return
  }
  func.func @transform_0(%arg0: i32) -> (i32, i32, i32) {
    %c0_i32 = arith.constant 0 : i32
    %c0_i32_0 = arith.constant 0 : i32
    %c0_i32_1 = arith.constant 0 : i32
    return %arg0, %c0_i32, %c0_i32_0 : i32, i32, i32
  }
  func.func @transform_1(%arg0: i32) -> (i32, i32, i32) {
    %c0_i32 = arith.constant 0 : i32
    %c0_i32_0 = arith.constant 0 : i32
    %c0_i32_1 = arith.constant 0 : i32
    %c0_i32_2 = arith.constant 0 : i32
    return %c0_i32, %c0_i32_0, %c0_i32_1 : i32, i32, i32
  }
  func.func @transform_2(%arg0: i32) -> (i32, i32) {
    %c0_i32 = arith.constant 0 : i32
    %c0_i32_0 = arith.constant 0 : i32
    %c0_i32_1 = arith.constant 0 : i32
    return %c0_i32, %c0_i32_0 : i32, i32
  }
  func.func @transform_3(%arg0: i32) -> (i32, i32, i32) {
    %c0_i32 = arith.constant 0 : i32
    %c0_i32_0 = arith.constant 0 : i32
    %c0_i32_1 = arith.constant 0 : i32
    return %arg0, %c0_i32, %c0_i32_0 : i32, i32, i32
  }
}

module attributes {stable_mosaic.version = 11 : i64} {
  func.func @_conv_s2_kernel(%arg0: i32, %arg1: memref<1x30x256xbf16, #tpu.memory_space<vmem>>, %arg2: memref<4x256x128xbf16, #tpu.memory_space<vmem>>, %arg3: memref<20x1xf32, #tpu.memory_space<vmem>>, %arg4: memref<1x20x128xbf16, #tpu.memory_space<vmem>>, %arg5: memref<1x1x128xf32, #tpu.memory_space<vmem>>, %arg6: memref<1x1x128xf32, #tpu.memory_space<vmem>>) attributes {dimension_semantics = [#tpu.dimension_semantics<parallel>], iteration_bounds = array<i64: 2>, scalar_prefetch = 0 : i64, scratch_operands = 0 : i64, tpu.core_type = #tpu.core_type<tc>, window_params = [{transform_indices = @transform_0, window_bounds = array<i64: 1, 30, 256>}, {pipeline_mode = #tpu.pipeline_mode<synchronous>, transform_indices = @transform_1, window_bounds = array<i64: 4, 256, 128>}, {pipeline_mode = #tpu.pipeline_mode<synchronous>, transform_indices = @transform_2, window_bounds = array<i64: 20, 1>}, {transform_indices = @transform_3, window_bounds = array<i64: 1, 20, 128>}, {transform_indices = @transform_4, window_bounds = array<i64: 1, 1, 128>}, {transform_indices = @transform_5, window_bounds = array<i64: 1, 1, 128>}]} {
    %c0 = arith.constant 0 : index
    %c0_0 = arith.constant 0 : index
    %c0_1 = arith.constant 0 : index
    %0 = vector.load %arg1[%c0, %c0_0, %c0_1] : memref<1x30x256xbf16, #tpu.memory_space<vmem>>, vector<1x20x256xbf16>
    %1 = vector.shape_cast %0 : vector<1x20x256xbf16> to vector<20x256xbf16>
    %c0_2 = arith.constant 0 : index
    %c0_3 = arith.constant 0 : index
    %c0_4 = arith.constant 0 : index
    %2 = vector.load %arg2[%c0_2, %c0_3, %c0_4] : memref<4x256x128xbf16, #tpu.memory_space<vmem>>, vector<1x256x128xbf16>
    %3 = vector.shape_cast %2 : vector<1x256x128xbf16> to vector<256x128xbf16>
    %cst = arith.constant dense<0.000000e+00> : vector<20x128xf32>
    %4 = tpu.matmul %1, %3, %cst {dimension_numbers = #tpu.dot_dimension_numbers<[1], [0], [0], [1], [0, 0, 1, 1], [], []>} : vector<20x256xbf16>, vector<256x128xbf16>, vector<20x128xf32> -> vector<20x128xf32>
    %c0_5 = arith.constant 0 : index
    %c1 = arith.constant 1 : index
    %c0_6 = arith.constant 0 : index
    %5 = vector.load %arg1[%c0_5, %c1, %c0_6] : memref<1x30x256xbf16, #tpu.memory_space<vmem>>, vector<1x20x256xbf16>
    %6 = vector.shape_cast %5 : vector<1x20x256xbf16> to vector<20x256xbf16>
    %c1_7 = arith.constant 1 : index
    %c0_8 = arith.constant 0 : index
    %c0_9 = arith.constant 0 : index
    %7 = vector.load %arg2[%c1_7, %c0_8, %c0_9] : memref<4x256x128xbf16, #tpu.memory_space<vmem>>, vector<1x256x128xbf16>
    %8 = vector.shape_cast %7 : vector<1x256x128xbf16> to vector<256x128xbf16>
    %cst_10 = arith.constant dense<0.000000e+00> : vector<20x128xf32>
    %9 = tpu.matmul %6, %8, %cst_10 {dimension_numbers = #tpu.dot_dimension_numbers<[1], [0], [0], [1], [0, 0, 1, 1], [], []>} : vector<20x256xbf16>, vector<256x128xbf16>, vector<20x128xf32> -> vector<20x128xf32>
    %10 = arith.addf %4, %9 : vector<20x128xf32>
    %c0_11 = arith.constant 0 : index
    %c5 = arith.constant 5 : index
    %c0_12 = arith.constant 0 : index
    %11 = vector.load %arg1[%c0_11, %c5, %c0_12] : memref<1x30x256xbf16, #tpu.memory_space<vmem>>, vector<1x20x256xbf16>
    %12 = vector.shape_cast %11 : vector<1x20x256xbf16> to vector<20x256xbf16>
    %c2 = arith.constant 2 : index
    %c0_13 = arith.constant 0 : index
    %c0_14 = arith.constant 0 : index
    %13 = vector.load %arg2[%c2, %c0_13, %c0_14] : memref<4x256x128xbf16, #tpu.memory_space<vmem>>, vector<1x256x128xbf16>
    %14 = vector.shape_cast %13 : vector<1x256x128xbf16> to vector<256x128xbf16>
    %cst_15 = arith.constant dense<0.000000e+00> : vector<20x128xf32>
    %15 = tpu.matmul %12, %14, %cst_15 {dimension_numbers = #tpu.dot_dimension_numbers<[1], [0], [0], [1], [0, 0, 1, 1], [], []>} : vector<20x256xbf16>, vector<256x128xbf16>, vector<20x128xf32> -> vector<20x128xf32>
    %16 = arith.addf %10, %15 : vector<20x128xf32>
    %c0_16 = arith.constant 0 : index
    %c6 = arith.constant 6 : index
    %c0_17 = arith.constant 0 : index
    %17 = vector.load %arg1[%c0_16, %c6, %c0_17] : memref<1x30x256xbf16, #tpu.memory_space<vmem>>, vector<1x20x256xbf16>
    %18 = vector.shape_cast %17 : vector<1x20x256xbf16> to vector<20x256xbf16>
    %c3 = arith.constant 3 : index
    %c0_18 = arith.constant 0 : index
    %c0_19 = arith.constant 0 : index
    %19 = vector.load %arg2[%c3, %c0_18, %c0_19] : memref<4x256x128xbf16, #tpu.memory_space<vmem>>, vector<1x256x128xbf16>
    %20 = vector.shape_cast %19 : vector<1x256x128xbf16> to vector<256x128xbf16>
    %cst_20 = arith.constant dense<0.000000e+00> : vector<20x128xf32>
    %21 = tpu.matmul %18, %20, %cst_20 {dimension_numbers = #tpu.dot_dimension_numbers<[1], [0], [0], [1], [0, 0, 1, 1], [], []>} : vector<20x256xbf16>, vector<256x128xbf16>, vector<20x128xf32> -> vector<20x128xf32>
    %22 = arith.addf %16, %21 : vector<20x128xf32>
    %c0_21 = arith.constant 0 : index
    %c0_22 = arith.constant 0 : index
    %23 = vector.load %arg3[%c0_21, %c0_22] : memref<20x1xf32, #tpu.memory_space<vmem>>, vector<20x1xf32>
    %24 = vector.broadcast %23 : vector<20x1xf32> to vector<20x128xf32>
    %25 = arith.mulf %22, %24 : vector<20x128xf32>
    %cst_23 = arith.constant dense<0.000000e+00> : vector<128xf32>
    %26 = vector.multi_reduction <add>, %25, %cst_23 [0] : vector<20x128xf32> to vector<128xf32>
    %27 = vector.shape_cast %26 : vector<128xf32> to vector<1x128xf32>
    %c0_24 = arith.constant 0 : index
    %c0_25 = arith.constant 0 : index
    %c0_26 = arith.constant 0 : index
    %28 = vector.load %arg5[%c0_24, %c0_25, %c0_26] : memref<1x1x128xf32, #tpu.memory_space<vmem>>, vector<1x1x128xf32>
    %29 = vector.shape_cast %28 : vector<1x1x128xf32> to vector<1x128xf32>
    %30 = vector.shape_cast %27 : vector<1x128xf32> to vector<1x1x128xf32>
    tpu.vector_store %arg5[%c0_24, %c0_25, %c0_26], %30 {strides = array<i32>} : memref<1x1x128xf32, #tpu.memory_space<vmem>>, vector<1x1x128xf32>,
    %31 = arith.mulf %22, %22 : vector<20x128xf32>
    %32 = vector.broadcast %23 : vector<20x1xf32> to vector<20x128xf32>
    %33 = arith.mulf %31, %32 : vector<20x128xf32>
    %cst_27 = arith.constant dense<0.000000e+00> : vector<128xf32>
    %34 = vector.multi_reduction <add>, %33, %cst_27 [0] : vector<20x128xf32> to vector<128xf32>
    %35 = vector.shape_cast %34 : vector<128xf32> to vector<1x128xf32>
    %c0_28 = arith.constant 0 : index
    %c0_29 = arith.constant 0 : index
    %c0_30 = arith.constant 0 : index
    %36 = vector.load %arg6[%c0_28, %c0_29, %c0_30] : memref<1x1x128xf32, #tpu.memory_space<vmem>>, vector<1x1x128xf32>
    %37 = vector.shape_cast %36 : vector<1x1x128xf32> to vector<1x128xf32>
    %38 = vector.shape_cast %35 : vector<1x128xf32> to vector<1x1x128xf32>
    tpu.vector_store %arg6[%c0_28, %c0_29, %c0_30], %38 {strides = array<i32>} : memref<1x1x128xf32, #tpu.memory_space<vmem>>, vector<1x1x128xf32>,
    %39 = arith.truncf %22 : vector<20x128xf32> to vector<20x128xbf16>
    %c0_31 = arith.constant 0 : index
    %c0_32 = arith.constant 0 : index
    %c0_33 = arith.constant 0 : index
    %40 = vector.load %arg4[%c0_31, %c0_32, %c0_33] : memref<1x20x128xbf16, #tpu.memory_space<vmem>>, vector<1x20x128xbf16>
    %41 = vector.shape_cast %40 : vector<1x20x128xbf16> to vector<20x128xbf16>
    %42 = vector.shape_cast %39 : vector<20x128xbf16> to vector<1x20x128xbf16>
    tpu.vector_store %arg4[%c0_31, %c0_32, %c0_33], %42 {strides = array<i32>} : memref<1x20x128xbf16, #tpu.memory_space<vmem>>, vector<1x20x128xbf16>,
    return
  }
  func.func @transform_0(%arg0: i32) -> (i32, i32, i32) {
    %c0_i32 = arith.constant 0 : i32
    %c0_i32_0 = arith.constant 0 : i32
    %c0_i32_1 = arith.constant 0 : i32
    return %arg0, %c0_i32, %c0_i32_0 : i32, i32, i32
  }
  func.func @transform_1(%arg0: i32) -> (i32, i32, i32) {
    %c0_i32 = arith.constant 0 : i32
    %c0_i32_0 = arith.constant 0 : i32
    %c0_i32_1 = arith.constant 0 : i32
    %c0_i32_2 = arith.constant 0 : i32
    return %c0_i32, %c0_i32_0, %c0_i32_1 : i32, i32, i32
  }
  func.func @transform_2(%arg0: i32) -> (i32, i32) {
    %c0_i32 = arith.constant 0 : i32
    %c0_i32_0 = arith.constant 0 : i32
    %c0_i32_1 = arith.constant 0 : i32
    return %c0_i32, %c0_i32_0 : i32, i32
  }
  func.func @transform_3(%arg0: i32) -> (i32, i32, i32) {
    %c0_i32 = arith.constant 0 : i32
    %c0_i32_0 = arith.constant 0 : i32
    %c0_i32_1 = arith.constant 0 : i32
    return %arg0, %c0_i32, %c0_i32_0 : i32, i32, i32
  }
  func.func @transform_4(%arg0: i32) -> (i32, i32, i32) {
    %c0_i32 = arith.constant 0 : i32
    %c0_i32_0 = arith.constant 0 : i32
    %c0_i32_1 = arith.constant 0 : i32
    return %arg0, %c0_i32, %c0_i32_0 : i32, i32, i32
  }
  func.func @transform_5(%arg0: i32) -> (i32, i32, i32) {
    %c0_i32 = arith.constant 0 : i32
    %c0_i32_0 = arith.constant 0 : i32
    %c0_i32_1 = arith.constant 0 : i32
    return %arg0, %c0_i32, %c0_i32_0 : i32, i32, i32
  }
}

module attributes {stable_mosaic.version = 11 : i64} {
  func.func @_bn_leaky_conv3_sigmoid_kernel(%arg0: i32, %arg1: memref<1x4x5x128xbf16, #tpu.memory_space<vmem>>, %arg2: memref<1x128xf32, #tpu.memory_space<vmem>>, %arg3: memref<1x128xf32, #tpu.memory_space<vmem>>, %arg4: memref<16x128xf32, #tpu.memory_space<vmem>>, %arg5: memref<1x1xf32, #tpu.memory_space<vmem>>, %arg6: memref<1x1x1xf32, #tpu.memory_space<vmem>>) attributes {dimension_semantics = [#tpu.dimension_semantics<parallel>], iteration_bounds = array<i64: 2>, scalar_prefetch = 0 : i64, scratch_operands = 0 : i64, tpu.core_type = #tpu.core_type<tc>, window_params = [{transform_indices = @transform_0, window_bounds = array<i64: 1, 4, 5, 128>}, {pipeline_mode = #tpu.pipeline_mode<synchronous>, transform_indices = @transform_1, window_bounds = array<i64: 1, 128>}, {pipeline_mode = #tpu.pipeline_mode<synchronous>, transform_indices = @transform_2, window_bounds = array<i64: 1, 128>}, {pipeline_mode = #tpu.pipeline_mode<synchronous>, transform_indices = @transform_3, window_bounds = array<i64: 16, 128>}, {pipeline_mode = #tpu.pipeline_mode<synchronous>, transform_indices = @transform_4, window_bounds = array<i64: 1, 1>}, {transform_indices = @transform_5, window_bounds = array<i64: 1, 1, 1>}]} {
    %c0 = arith.constant 0 : index
    %c0_0 = arith.constant 0 : index
    %c0_1 = arith.constant 0 : index
    %c0_2 = arith.constant 0 : index
    %0 = vector.load %arg1[%c0, %c0_0, %c0_1, %c0_2] : memref<1x4x5x128xbf16, #tpu.memory_space<vmem>>, vector<1x4x5x128xbf16>
    %1 = vector.shape_cast %0 : vector<1x4x5x128xbf16> to vector<4x5x128xbf16>
    %2 = arith.extf %1 : vector<4x5x128xbf16> to vector<4x5x128xf32>
    %c0_3 = arith.constant 0 : index
    %c0_4 = arith.constant 0 : index
    %3 = vector.load %arg2[%c0_3, %c0_4] : memref<1x128xf32, #tpu.memory_space<vmem>>, vector<1x128xf32>
    %4 = vector.shape_cast %3 : vector<1x128xf32> to vector<1x1x128xf32>
    %5 = vector.broadcast %4 : vector<1x1x128xf32> to vector<4x5x128xf32>
    %6 = arith.mulf %2, %5 : vector<4x5x128xf32>
    %c0_5 = arith.constant 0 : index
    %c0_6 = arith.constant 0 : index
    %7 = vector.load %arg3[%c0_5, %c0_6] : memref<1x128xf32, #tpu.memory_space<vmem>>, vector<1x128xf32>
    %8 = vector.shape_cast %7 : vector<1x128xf32> to vector<1x1x128xf32>
    %9 = vector.broadcast %8 : vector<1x1x128xf32> to vector<4x5x128xf32>
    %10 = arith.addf %6, %9 : vector<4x5x128xf32>
    %cst = arith.constant 0.000000e+00 : f32
    %11 = vector.broadcast %cst : f32 to vector<4x5x128xf32>
    %12 = arith.cmpf oge, %10, %11 : vector<4x5x128xf32>
    %cst_7 = arith.constant 2.000000e-01 : f32
    %13 = vector.broadcast %cst_7 : f32 to vector<4x5x128xf32>
    %14 = arith.mulf %13, %10 : vector<4x5x128xf32>
    %15 = arith.select %12, %10, %14 : vector<4x5x128xi1>, vector<4x5x128xf32>
    %16 = vector.extract_strided_slice %15 {offsets = [0, 0, 0], sizes = [1, 1, 128], strides = [1, 1, 1]} : vector<4x5x128xf32> to vector<1x1x128xf32>
    %c0_8 = arith.constant 0 : index
    %c0_9 = arith.constant 0 : index
    %17 = vector.load %arg4[%c0_8, %c0_9] : memref<16x128xf32, #tpu.memory_space<vmem>>, vector<1x128xf32>
    %18 = vector.shape_cast %17 : vector<1x128xf32> to vector<1x1x128xf32>
    %19 = arith.mulf %16, %18 : vector<1x1x128xf32>
    %cst_10 = arith.constant dense<0.000000e+00> : vector<1x1xf32>
    %20 = vector.multi_reduction <add>, %19, %cst_10 [2] : vector<1x1x128xf32> to vector<1x1xf32>
    %21 = vector.extract_strided_slice %15 {offsets = [0, 1, 0], sizes = [1, 1, 128], strides = [1, 1, 1]} : vector<4x5x128xf32> to vector<1x1x128xf32>
    %c1 = arith.constant 1 : index
    %c0_11 = arith.constant 0 : index
    %22 = vector.load %arg4[%c1, %c0_11] : memref<16x128xf32, #tpu.memory_space<vmem>>, vector<1x128xf32>
    %23 = vector.shape_cast %22 : vector<1x128xf32> to vector<1x1x128xf32>
    %24 = arith.mulf %21, %23 : vector<1x1x128xf32>
    %cst_12 = arith.constant dense<0.000000e+00> : vector<1x1xf32>
    %25 = vector.multi_reduction <add>, %24, %cst_12 [2] : vector<1x1x128xf32> to vector<1x1xf32>
    %26 = arith.addf %20, %25 : vector<1x1xf32>
    %27 = vector.extract_strided_slice %15 {offsets = [0, 2, 0], sizes = [1, 1, 128], strides = [1, 1, 1]} : vector<4x5x128xf32> to vector<1x1x128xf32>
    %c2 = arith.constant 2 : index
    %c0_13 = arith.constant 0 : index
    %28 = vector.load %arg4[%c2, %c0_13] : memref<16x128xf32, #tpu.memory_space<vmem>>, vector<1x128xf32>
    %29 = vector.shape_cast %28 : vector<1x128xf32> to vector<1x1x128xf32>
    %30 = arith.mulf %27, %29 : vector<1x1x128xf32>
    %cst_14 = arith.constant dense<0.000000e+00> : vector<1x1xf32>
    %31 = vector.multi_reduction <add>, %30, %cst_14 [2] : vector<1x1x128xf32> to vector<1x1xf32>
    %32 = arith.addf %26, %31 : vector<1x1xf32>
    %33 = vector.extract_strided_slice %15 {offsets = [0, 3, 0], sizes = [1, 1, 128], strides = [1, 1, 1]} : vector<4x5x128xf32> to vector<1x1x128xf32>
    %c3 = arith.constant 3 : index
    %c0_15 = arith.constant 0 : index
    %34 = vector.load %arg4[%c3, %c0_15] : memref<16x128xf32, #tpu.memory_space<vmem>>, vector<1x128xf32>
    %35 = vector.shape_cast %34 : vector<1x128xf32> to vector<1x1x128xf32>
    %36 = arith.mulf %33, %35 : vector<1x1x128xf32>
    %cst_16 = arith.constant dense<0.000000e+00> : vector<1x1xf32>
    %37 = vector.multi_reduction <add>, %36, %cst_16 [2] : vector<1x1x128xf32> to vector<1x1xf32>
    %38 = arith.addf %32, %37 : vector<1x1xf32>
    %39 = vector.extract_strided_slice %15 {offsets = [1, 0, 0], sizes = [1, 1, 128], strides = [1, 1, 1]} : vector<4x5x128xf32> to vector<1x1x128xf32>
    %c4 = arith.constant 4 : index
    %c0_17 = arith.constant 0 : index
    %40 = vector.load %arg4[%c4, %c0_17] : memref<16x128xf32, #tpu.memory_space<vmem>>, vector<1x128xf32>
    %41 = vector.shape_cast %40 : vector<1x128xf32> to vector<1x1x128xf32>
    %42 = arith.mulf %39, %41 : vector<1x1x128xf32>
    %cst_18 = arith.constant dense<0.000000e+00> : vector<1x1xf32>
    %43 = vector.multi_reduction <add>, %42, %cst_18 [2] : vector<1x1x128xf32> to vector<1x1xf32>
    %44 = arith.addf %38, %43 : vector<1x1xf32>
    %45 = vector.extract_strided_slice %15 {offsets = [1, 1, 0], sizes = [1, 1, 128], strides = [1, 1, 1]} : vector<4x5x128xf32> to vector<1x1x128xf32>
    %c5 = arith.constant 5 : index
    %c0_19 = arith.constant 0 : index
    %46 = vector.load %arg4[%c5, %c0_19] : memref<16x128xf32, #tpu.memory_space<vmem>>, vector<1x128xf32>
    %47 = vector.shape_cast %46 : vector<1x128xf32> to vector<1x1x128xf32>
    %48 = arith.mulf %45, %47 : vector<1x1x128xf32>
    %cst_20 = arith.constant dense<0.000000e+00> : vector<1x1xf32>
    %49 = vector.multi_reduction <add>, %48, %cst_20 [2] : vector<1x1x128xf32> to vector<1x1xf32>
    %50 = arith.addf %44, %49 : vector<1x1xf32>
    %51 = vector.extract_strided_slice %15 {offsets = [1, 2, 0], sizes = [1, 1, 128], strides = [1, 1, 1]} : vector<4x5x128xf32> to vector<1x1x128xf32>
    %c6 = arith.constant 6 : index
    %c0_21 = arith.constant 0 : index
    %52 = vector.load %arg4[%c6, %c0_21] : memref<16x128xf32, #tpu.memory_space<vmem>>, vector<1x128xf32>
    %53 = vector.shape_cast %52 : vector<1x128xf32> to vector<1x1x128xf32>
    %54 = arith.mulf %51, %53 : vector<1x1x128xf32>
    %cst_22 = arith.constant dense<0.000000e+00> : vector<1x1xf32>
    %55 = vector.multi_reduction <add>, %54, %cst_22 [2] : vector<1x1x128xf32> to vector<1x1xf32>
    %56 = arith.addf %50, %55 : vector<1x1xf32>
    %57 = vector.extract_strided_slice %15 {offsets = [1, 3, 0], sizes = [1, 1, 128], strides = [1, 1, 1]} : vector<4x5x128xf32> to vector<1x1x128xf32>
    %c7 = arith.constant 7 : index
    %c0_23 = arith.constant 0 : index
    %58 = vector.load %arg4[%c7, %c0_23] : memref<16x128xf32, #tpu.memory_space<vmem>>, vector<1x128xf32>
    %59 = vector.shape_cast %58 : vector<1x128xf32> to vector<1x1x128xf32>
    %60 = arith.mulf %57, %59 : vector<1x1x128xf32>
    %cst_24 = arith.constant dense<0.000000e+00> : vector<1x1xf32>
    %61 = vector.multi_reduction <add>, %60, %cst_24 [2] : vector<1x1x128xf32> to vector<1x1xf32>
    %62 = arith.addf %56, %61 : vector<1x1xf32>
    %63 = vector.extract_strided_slice %15 {offsets = [2, 0, 0], sizes = [1, 1, 128], strides = [1, 1, 1]} : vector<4x5x128xf32> to vector<1x1x128xf32>
    %c8 = arith.constant 8 : index
    %c0_25 = arith.constant 0 : index
    %64 = vector.load %arg4[%c8, %c0_25] : memref<16x128xf32, #tpu.memory_space<vmem>>, vector<1x128xf32>
    %65 = vector.shape_cast %64 : vector<1x128xf32> to vector<1x1x128xf32>
    %66 = arith.mulf %63, %65 : vector<1x1x128xf32>
    %cst_26 = arith.constant dense<0.000000e+00> : vector<1x1xf32>
    %67 = vector.multi_reduction <add>, %66, %cst_26 [2] : vector<1x1x128xf32> to vector<1x1xf32>
    %68 = arith.addf %62, %67 : vector<1x1xf32>
    %69 = vector.extract_strided_slice %15 {offsets = [2, 1, 0], sizes = [1, 1, 128], strides = [1, 1, 1]} : vector<4x5x128xf32> to vector<1x1x128xf32>
    %c9 = arith.constant 9 : index
    %c0_27 = arith.constant 0 : index
    %70 = vector.load %arg4[%c9, %c0_27] : memref<16x128xf32, #tpu.memory_space<vmem>>, vector<1x128xf32>
    %71 = vector.shape_cast %70 : vector<1x128xf32> to vector<1x1x128xf32>
    %72 = arith.mulf %69, %71 : vector<1x1x128xf32>
    %cst_28 = arith.constant dense<0.000000e+00> : vector<1x1xf32>
    %73 = vector.multi_reduction <add>, %72, %cst_28 [2] : vector<1x1x128xf32> to vector<1x1xf32>
    %74 = arith.addf %68, %73 : vector<1x1xf32>
    %75 = vector.extract_strided_slice %15 {offsets = [2, 2, 0], sizes = [1, 1, 128], strides = [1, 1, 1]} : vector<4x5x128xf32> to vector<1x1x128xf32>
    %c10 = arith.constant 10 : index
    %c0_29 = arith.constant 0 : index
    %76 = vector.load %arg4[%c10, %c0_29] : memref<16x128xf32, #tpu.memory_space<vmem>>, vector<1x128xf32>
    %77 = vector.shape_cast %76 : vector<1x128xf32> to vector<1x1x128xf32>
    %78 = arith.mulf %75, %77 : vector<1x1x128xf32>
    %cst_30 = arith.constant dense<0.000000e+00> : vector<1x1xf32>
    %79 = vector.multi_reduction <add>, %78, %cst_30 [2] : vector<1x1x128xf32> to vector<1x1xf32>
    %80 = arith.addf %74, %79 : vector<1x1xf32>
    %81 = vector.extract_strided_slice %15 {offsets = [2, 3, 0], sizes = [1, 1, 128], strides = [1, 1, 1]} : vector<4x5x128xf32> to vector<1x1x128xf32>
    %c11 = arith.constant 11 : index
    %c0_31 = arith.constant 0 : index
    %82 = vector.load %arg4[%c11, %c0_31] : memref<16x128xf32, #tpu.memory_space<vmem>>, vector<1x128xf32>
    %83 = vector.shape_cast %82 : vector<1x128xf32> to vector<1x1x128xf32>
    %84 = arith.mulf %81, %83 : vector<1x1x128xf32>
    %cst_32 = arith.constant dense<0.000000e+00> : vector<1x1xf32>
    %85 = vector.multi_reduction <add>, %84, %cst_32 [2] : vector<1x1x128xf32> to vector<1x1xf32>
    %86 = arith.addf %80, %85 : vector<1x1xf32>
    %87 = vector.extract_strided_slice %15 {offsets = [3, 0, 0], sizes = [1, 1, 128], strides = [1, 1, 1]} : vector<4x5x128xf32> to vector<1x1x128xf32>
    %c12 = arith.constant 12 : index
    %c0_33 = arith.constant 0 : index
    %88 = vector.load %arg4[%c12, %c0_33] : memref<16x128xf32, #tpu.memory_space<vmem>>, vector<1x128xf32>
    %89 = vector.shape_cast %88 : vector<1x128xf32> to vector<1x1x128xf32>
    %90 = arith.mulf %87, %89 : vector<1x1x128xf32>
    %cst_34 = arith.constant dense<0.000000e+00> : vector<1x1xf32>
    %91 = vector.multi_reduction <add>, %90, %cst_34 [2] : vector<1x1x128xf32> to vector<1x1xf32>
    %92 = arith.addf %86, %91 : vector<1x1xf32>
    %93 = vector.extract_strided_slice %15 {offsets = [3, 1, 0], sizes = [1, 1, 128], strides = [1, 1, 1]} : vector<4x5x128xf32> to vector<1x1x128xf32>
    %c13 = arith.constant 13 : index
    %c0_35 = arith.constant 0 : index
    %94 = vector.load %arg4[%c13, %c0_35] : memref<16x128xf32, #tpu.memory_space<vmem>>, vector<1x128xf32>
    %95 = vector.shape_cast %94 : vector<1x128xf32> to vector<1x1x128xf32>
    %96 = arith.mulf %93, %95 : vector<1x1x128xf32>
    %cst_36 = arith.constant dense<0.000000e+00> : vector<1x1xf32>
    %97 = vector.multi_reduction <add>, %96, %cst_36 [2] : vector<1x1x128xf32> to vector<1x1xf32>
    %98 = arith.addf %92, %97 : vector<1x1xf32>
    %99 = vector.extract_strided_slice %15 {offsets = [3, 2, 0], sizes = [1, 1, 128], strides = [1, 1, 1]} : vector<4x5x128xf32> to vector<1x1x128xf32>
    %c14 = arith.constant 14 : index
    %c0_37 = arith.constant 0 : index
    %100 = vector.load %arg4[%c14, %c0_37] : memref<16x128xf32, #tpu.memory_space<vmem>>, vector<1x128xf32>
    %101 = vector.shape_cast %100 : vector<1x128xf32> to vector<1x1x128xf32>
    %102 = arith.mulf %99, %101 : vector<1x1x128xf32>
    %cst_38 = arith.constant dense<0.000000e+00> : vector<1x1xf32>
    %103 = vector.multi_reduction <add>, %102, %cst_38 [2] : vector<1x1x128xf32> to vector<1x1xf32>
    %104 = arith.addf %98, %103 : vector<1x1xf32>
    %105 = vector.extract_strided_slice %15 {offsets = [3, 3, 0], sizes = [1, 1, 128], strides = [1, 1, 1]} : vector<4x5x128xf32> to vector<1x1x128xf32>
    %c15 = arith.constant 15 : index
    %c0_39 = arith.constant 0 : index
    %106 = vector.load %arg4[%c15, %c0_39] : memref<16x128xf32, #tpu.memory_space<vmem>>, vector<1x128xf32>
    %107 = vector.shape_cast %106 : vector<1x128xf32> to vector<1x1x128xf32>
    %108 = arith.mulf %105, %107 : vector<1x1x128xf32>
    %cst_40 = arith.constant dense<0.000000e+00> : vector<1x1xf32>
    %109 = vector.multi_reduction <add>, %108, %cst_40 [2] : vector<1x1x128xf32> to vector<1x1xf32>
    %110 = arith.addf %104, %109 : vector<1x1xf32>
    %c0_41 = arith.constant 0 : index
    %c0_42 = arith.constant 0 : index
    %111 = vector.load %arg5[%c0_41, %c0_42] : memref<1x1xf32, #tpu.memory_space<vmem>>, vector<1x1xf32>
    %112 = arith.addf %110, %111 : vector<1x1xf32>
    %cst_43 = arith.constant 0.000000e+00 : f32
    %113 = vector.broadcast %cst_43 : f32 to vector<1x1xf32>
    %114 = arith.subf %113, %112 : vector<1x1xf32>
    %115 = math.exp %114 : vector<1x1xf32>
    %cst_44 = arith.constant 1.000000e+00 : f32
    %116 = vector.broadcast %cst_44 : f32 to vector<1x1xf32>
    %117 = arith.addf %116, %115 : vector<1x1xf32>
    %cst_45 = arith.constant 1.000000e+00 : f32
    %118 = vector.broadcast %cst_45 : f32 to vector<1x1xf32>
    %119 = arith.divf %118, %117 : vector<1x1xf32>
    %c0_46 = arith.constant 0 : index
    %c0_47 = arith.constant 0 : index
    %c0_48 = arith.constant 0 : index
    %120 = vector.load %arg6[%c0_46, %c0_47, %c0_48] : memref<1x1x1xf32, #tpu.memory_space<vmem>>, vector<1x1x1xf32>
    %121 = vector.shape_cast %120 : vector<1x1x1xf32> to vector<1x1xf32>
    %122 = vector.shape_cast %119 : vector<1x1xf32> to vector<1x1x1xf32>
    tpu.vector_store %arg6[%c0_46, %c0_47, %c0_48], %122 {strides = array<i32>} : memref<1x1x1xf32, #tpu.memory_space<vmem>>, vector<1x1x1xf32>,
    return
  }
  func.func @transform_0(%arg0: i32) -> (i32, i32, i32, i32) {
    %c0_i32 = arith.constant 0 : i32
    %c0_i32_0 = arith.constant 0 : i32
    %c0_i32_1 = arith.constant 0 : i32
    %c0_i32_2 = arith.constant 0 : i32
    return %arg0, %c0_i32, %c0_i32_0, %c0_i32_1 : i32, i32, i32, i32
  }
  func.func @transform_1(%arg0: i32) -> (i32, i32) {
    %c0_i32 = arith.constant 0 : i32
    %c0_i32_0 = arith.constant 0 : i32
    %c0_i32_1 = arith.constant 0 : i32
    return %c0_i32, %c0_i32_0 : i32, i32
  }
  func.func @transform_2(%arg0: i32) -> (i32, i32) {
    %c0_i32 = arith.constant 0 : i32
    %c0_i32_0 = arith.constant 0 : i32
    %c0_i32_1 = arith.constant 0 : i32
    return %c0_i32, %c0_i32_0 : i32, i32
  }
  func.func @transform_3(%arg0: i32) -> (i32, i32) {
    %c0_i32 = arith.constant 0 : i32
    %c0_i32_0 = arith.constant 0 : i32
    %c0_i32_1 = arith.constant 0 : i32
    return %c0_i32, %c0_i32_0 : i32, i32
  }
  func.func @transform_4(%arg0: i32) -> (i32, i32) {
    %c0_i32 = arith.constant 0 : i32
    %c0_i32_0 = arith.constant 0 : i32
    %c0_i32_1 = arith.constant 0 : i32
    return %c0_i32, %c0_i32_0 : i32, i32
  }
  func.func @transform_5(%arg0: i32) -> (i32, i32, i32) {
    %c0_i32 = arith.constant 0 : i32
    %c0_i32_0 = arith.constant 0 : i32
    %c0_i32_1 = arith.constant 0 : i32
    return %arg0, %c0_i32, %c0_i32_0 : i32, i32, i32
  }
}

</mosaic_0001>

<llo_original>
// kernel: discriminator_forward.3
$region0: #{discriminator_forward.3}
  #allocation0 [shape = 'u32[]', space=smem, size = 0x4, offset = 0x4, fixed_abs, tag = 'smem constant byte address 0x4 - core index']
  #allocation1 [shape = 'u32[72,128]{1,0:T(1,128)}', space=vmem, size = 0x9000, scoped, tag = 'internal scratch']
  %s0 = inlined_call_operand.vmem [shape: bf16[2,90,12], index: 0, kind: input, shape index: {}]
  %s1 = inlined_call_operand.vmem [shape: bf16[4,12,64], index: 1, kind: input, shape index: {}]
  %s2 = inlined_call_operand.vmem [shape: f32[1,64], index: 2, kind: input, shape index: {}]
  %s3 = inlined_call_operand.vmem [shape: bf16[2,72,64], index: 3, kind: output, shape index: {}]
  %s4 = sld [smem:[#allocation0]]
  $region45: #{discriminator_forward.3} parent=0
    _
  %s6 = ssub.s32 1, %s4
  %s7 = scalar_select 0, %s6, %s4
  loop: start=0, step=1, limit=4
  $region2: #{discriminator_forward.3} parent=0 // loop_pre_header
    _
  $region3: #{discriminator_forward.3} parent=0 // loop_header
    %s9 = sphi 0, %s13
    %p10 = scmp.ge.s32.totalorder %s9, 4
    %s19 = sphi 0, %s21
    %s22 = sphi 0, %s19
    %s23 = sphi 0, %s22
    %s39 = sphi 0, %s23
    %s43 = sphi 0, %s43
    %s45 = sphi 0, %s43
    %s46 = sphi 0, %s45
    %s60 = sphi 0, %s46
    %s64 = sphi 0, %s64
    %s66 = sphi 0, %s64
    %s67 = sphi 0, %s66
    %s81 = sphi 0, %s67
    %s87 = sphi 0, %s89
    %s90 = sphi 0, %s87
    %s91 = sphi 0, %s90
    %s107 = sphi 0, %s91
  $region4: #{discriminator_forward.3} parent=0 // loop_header_branch
    %12 = sbr.rel (%p10) target = $region8
  $region5: #{discriminator_forward.3} parent=0 // loop_body
    %s14 = ssub.s32 %s9, 1
    %s15 = ssub.s32 %s9, 2
    %s16 = sadd.s32 %s9, 1
    %s17 = ssub.s32 %s9, %s16
    %p18 = scmp.eq.s32.totalorder %s17, 0
    %s20 = sadd.s32 %s19, 1
    %s21 = scalar_select %p18, %s19, %s20
    %p24 = pneg %p18
    %p25 = scmp.eq.s32.totalorder %s9, 1
    %p26 = por %p24, %p25
    %p27 = scmp.ne.s32.totalorder %s19, %s22
    %p28 = scmp.eq.s32.totalorder %s9, 0
    %p29 = por %p27, %p28
    %p30 = scmp.ne.s32.totalorder %s19, %s22
    %p31 = scmp.eq.s32.totalorder %s14, 1
    %p32 = por %p30, %p31
    %p33 = scmp.ne.s32.totalorder %s22, %s23
    %p34 = scmp.eq.s32.totalorder %s14, 0
    %p35 = por %p33, %p34
    %p36 = scmp.ne.s32.totalorder %s22, %s23
    %p37 = scmp.eq.s32.totalorder %s15, 1
    %p38 = por %p36, %p37
    %p40 = scmp.ne.s32.totalorder %s23, %s39
    %p41 = scmp.eq.s32.totalorder %s15, 0
    %p42 = por %p40, %p41
    %s44 = sadd.s32 %s43, 1
    %p47 = scmp.eq.s32.totalorder %s9, 1
    %p48 = scmp.ne.s32.totalorder %s43, %s45
    %p49 = scmp.eq.s32.totalorder %s9, 0
    %p50 = por %p48, %p49
    %p51 = scmp.ne.s32.totalorder %s43, %s45
    %p52 = scmp.eq.s32.totalorder %s14, 1
    %p53 = por %p51, %p52
    %p54 = scmp.ne.s32.totalorder %s45, %s46
    %p55 = scmp.eq.s32.totalorder %s14, 0
    %p56 = por %p54, %p55
    %p57 = scmp.ne.s32.totalorder %s45, %s46
    %p58 = scmp.eq.s32.totalorder %s15, 1
    %p59 = por %p57, %p58
    %p61 = scmp.ne.s32.totalorder %s46, %s60
    %p62 = scmp.eq.s32.totalorder %s15, 0
    %p63 = por %p61, %p62
    %s65 = sadd.s32 %s64, 1
    %p68 = scmp.eq.s32.totalorder %s9, 1
    %p69 = scmp.ne.s32.totalorder %s64, %s66
    %p70 = scmp.eq.s32.totalorder %s9, 0
    %p71 = por %p69, %p70
    %p72 = scmp.ne.s32.totalorder %s64, %s66
    %p73 = scmp.eq.s32.totalorder %s14, 1
    %p74 = por %p72, %p73
    %p75 = scmp.ne.s32.totalorder %s66, %s67
    %p76 = scmp.eq.s32.totalorder %s14, 0
    %p77 = por %p75, %p76
    %p78 = scmp.ne.s32.totalorder %s66, %s67
    %p79 = scmp.eq.s32.totalorder %s15, 1
    %p80 = por %p78, %p79
    %p82 = scmp.ne.s32.totalorder %s67, %s81
    %p83 = scmp.eq.s32.totalorder %s15, 0
    %p84 = por %p82, %p83
    %s85 = ssub.s32 %s9, %s16
    %p86 = scmp.eq.s32.totalorder %s85, 0
    %s88 = sadd.s32 %s87, 1
    %s89 = scalar_select %p86, %s87, %s88
    %p92 = pneg %p86
    %p93 = scmp.eq.s32.totalorder %s9, 1
    %p94 = por %p92, %p93
    %p95 = scmp.ne.s32.totalorder %s87, %s90
    %p96 = scmp.eq.s32.totalorder %s9, 0
    %p97 = por %p95, %p96
    %p98 = scmp.ne.s32.totalorder %s87, %s90
    %p99 = scmp.eq.s32.totalorder %s14, 1
    %p100 = por %p98, %p99
    %p101 = scmp.ne.s32.totalorder %s90, %s91
    %p102 = scmp.eq.s32.totalorder %s14, 0
    %p103 = por %p101, %p102
    %p104 = scmp.ne.s32.totalorder %s90, %s91
    %p105 = scmp.eq.s32.totalorder %s15, 1
    %p106 = por %p104, %p105
    %p108 = scmp.ne.s32.totalorder %s91, %s107
    %p109 = scmp.eq.s32.totalorder %s15, 0
    %p110 = por %p108, %p109
    %p111 = scmp.le.s32.totalorder 1, %s9
    %p112 = scmp.lt.s32.totalorder %s9, 3
    %p113 = pnand %p111, %p112
    %p114 = pneg %p113
    // Predicated region
    $region9: #{discriminator_forward.3} parent=5 // pred_check
      _
    $region10: #{discriminator_forward.3} parent=5 // pred_check_branch
      %116 = sbr.rel (%p113) target = $region12
    $region11: #{discriminator_forward.3} parent=5 // pred_region
      %s117 = ssub.s32 %s9, 1
      // Predicated region
      $region13: #{discriminator_forward.3} parent=11 // pred_check
        %p118 = pneg %p56
      $region14: #{discriminator_forward.3} parent=11 // pred_check_branch
        %120 = sbr.rel (%p118) target = $region16
      $region15: #{discriminator_forward.3} parent=11 // pred_region
        _
      $region16: #{discriminator_forward.3} parent=11 // pred_fallthru
        _
      // Predicated region
      $region17: #{discriminator_forward.3} parent=11 // pred_check
        %p121 = pneg %p77
      $region18: #{discriminator_forward.3} parent=11 // pred_check_branch
        %123 = sbr.rel (%p121) target = $region20
      $region19: #{discriminator_forward.3} parent=11 // pred_region
        _
      $region20: #{discriminator_forward.3} parent=11 // pred_fallthru
        _
    $region12: #{discriminator_forward.3} parent=5 // pred_fallthru
      _
    %p124 = scmp.lt.s32.totalorder %s9, 2
    // Predicated region
    $region21: #{discriminator_forward.3} parent=5 // pred_check
      %p125 = pneg %p124
    $region22: #{discriminator_forward.3} parent=5 // pred_check_branch
      %127 = sbr.rel (%p125) target = $region24
    $region23: #{discriminator_forward.3} parent=5 // pred_region
      // Predicated region
      $region25: #{discriminator_forward.3} parent=23 // pred_check
        %p128 = pneg %p29
      $region26: #{discriminator_forward.3} parent=23 // pred_check_branch
        %130 = sbr.rel (%p128) target = $region28
      $region27: #{discriminator_forward.3} parent=23 // pred_region
        %p131 = scmp.lt.s32.totalorder %s9, 1
        %s132 = scalar_select %p131, %s9, 1
        %s133 = smul.addr %s132, 12
        %s134 = smul.addr %s133, 4
        %s135 = scalar_lea.vmem %s0, %s134
      $region28: #{discriminator_forward.3} parent=23 // pred_fallthru
        _
    $region24: #{discriminator_forward.3} parent=5 // pred_fallthru
      _
    %p136 = scmp.le.s32.totalorder 1, %s9
    %p137 = scmp.lt.s32.totalorder %s9, 3
    %p138 = pnand %p136, %p137
    %p139 = pneg %p138
    // Predicated region
    $region29: #{discriminator_forward.3} parent=5 // pred_check
      _
    $region30: #{discriminator_forward.3} parent=5 // pred_check_branch
      %141 = sbr.rel (%p138) target = $region32
    $region31: #{discriminator_forward.3} parent=5 // pred_region
      %s142 = ssub.s32 %s9, 1
      %p143 = scmp.lt.s32.totalorder %s14, 1
      %s144 = scalar_select %p143, %s14, 1
      %s145 = smul.addr %s144, 12
      %s146 = smul.addr %s145, 4
      %s147 = scalar_lea.vmem %s0, %s146
      %p148 = pneg %p35
      %p149 = pneg %p32
      %p150 = pneg %p56
      %p151 = pneg %p53
      %p152 = pneg %p77
      %p153 = pneg %p74
      %p154 = pneg %p103
      %p155 = pneg %p100
      %p156 = scmp.lt.s32.totalorder %s14, 1
      %s157 = scalar_select %p156, %s14, 1
      %s158 = smul.addr %s157, 9
      %s159 = smul.addr %s158, 4
      %s160 = scalar_lea.vmem %s3, %s159
      %p161 = scmp.lt.s32.totalorder %s14, 1
      %s162 = scalar_select %p161, %s14, 1
      %s163 = smul.addr %s162, 12
      %s164 = smul.addr %s163, 4
      %s165 = scalar_lea.vmem %s0, %s164
      %p166 = scmp.lt.s32.totalorder %s14, 1
      %s167 = scalar_select %p166, %s14, 1
      %s168 = smul.addr %s167, 9
      %s169 = smul.addr %s168, 4
      %s170 = scalar_lea.vmem %s3, %s169
      %v172 = vld [vmem:[%s165] sm:$0xf]
      %v173 = vld [vmem:[%s165 + $0x4] sm:$0xf]
      %v174 = vld [vmem:[%s165 + $0x8] sm:$0xf]
      %v175 = vld [vmem:[%s165 + $0xc] sm:$0xf]
      %v176 = vld [vmem:[%s165 + $0x10] sm:$0xf]
      %v177 = vld [vmem:[%s165 + $0x14] sm:$0xf]
      %v178 = vld [vmem:[%s165 + $0x18] sm:$0xf]
      %v179 = vld [vmem:[%s165 + $0x1c] sm:$0xf]
      %v180 = vld [vmem:[%s165 + $0x20] sm:$0xf]
      %v181 = vld [vmem:[%s1] sm:$0xf]
      %v182 = vld [vmem:[%s1 + $0x4] sm:$0x3]
      %v183 = vld [vmem:[%s165 + $0x24] sm:$0x1]
      %s184 = scalar_lea.vmem %s1, 8
      %v185 = vld [vmem:[%s184] sm:$0xf]
      %v186 = vld [vmem:[%s184 + $0x4] sm:$0x3]
      %v197 = vunpack.c.l.b16 %v172
      %v198 = vunpack.c.l.b16 %v173
      %v199 = vunpack.c.l.b16 %v174
      %v200 = vunpack.c.l.b16 %v175
      %v201 = vunpack.c.l.b16 %v176
      %v202 = vunpack.c.l.b16 %v177
      %v203 = vunpack.c.l.b16 %v178
      %v204 = vunpack.c.l.b16 %v179
      %v205 = vunpack.c.l.b16 %v180
      %v206 = vunpack.c.l.b16 %v183
      %v207 = vpack.c.b16 %v198, %v197
      %v208 = vpack.c.b16 %v200, %v199
      %v209 = vpack.c.b16 %v202, %v201
      %v210 = vpack.c.b16 %v204, %v203
      %v211 = vpack.c.b16 %v206, %v205
      %vm212 = vsmask.f32 7424
      %v214 = vshrl.u32 %v207, 16
      %v216 = vshll.u32 %v207, 16
      %v218 = vrot.slane %v216, 1
      %v219 = vor.u32 %v214, %v218
      %v221 = vshll.u32 %v208, 16
      %v223 = vrot.slane %v221, 1
      %v224 = vsel %vm212, %v219, %v223
      %v225 = vshrl.u32 %v208, 16
      %v227 = vor.u32 %v225, %v223
      %v229 = vshll.u32 %v209, 16
      %v231 = vrot.slane %v229, 1
      %v232 = vsel %vm212, %v227, %v231
      %v233 = vshrl.u32 %v209, 16
      %v235 = vor.u32 %v233, %v231
      %v237 = vshll.u32 %v210, 16
      %v239 = vrot.slane %v237, 1
      %v240 = vsel %vm212, %v235, %v239
      %v241 = vshrl.u32 %v210, 16
      %v243 = vor.u32 %v241, %v239
      %v245 = vshll.u32 %v211, 16
      %v247 = vrot.slane %v245, 1
      %v248 = vsel %vm212, %v243, %v247
      %v249 = vshrl.u32 %v211, 16
      %v251 = vor.u32 %v249, %v247
      %v254 = vunpack.c.l.b16 %v185
      %v255 = vunpack.c.l.b16 %v186
      %v256 = vpack.c.b16 %v255, %v254
      %vm257 = vcmask 97280
      %v259 = vsel %vm257, %v224, 0
      %v262 = vsel %vm257, %v232, 0
      %v265 = vsel %vm257, %v240, 0
      %v268 = vsel %vm257, %v248, 0
      %v271 = vsel %vm257, %v251, 0
      %vm273 = vcmask 1045504
      %v275 = vsel %vm273, %v256, 0
      %277 = vmatpush.bf16.msra.mxu0 0
      %278 = vmatpush.bf16.msra.mxu0 0
      %279 = vmatpush.bf16.msra.mxu0 0
      %280 = vmatpush.bf16.msra.mxu0 0
      %281 = vmatpush.bf16.msra.mxu0 0
      %282 = vmatpush.bf16.msra.mxu0 0
      %283 = vmatpush.bf16.msra.mxu0 0
      %284 = vmatpush.bf16.msra.mxu0 %v275
      %285 = vmatmul.bf16.gmra.mxu0 %v259
      %v286 = vpop.f32.mrf.mxu0
      %v287 = vadd.f32 0.0, %v286
      %v288 = vpop.f32.mrf.mxu0
      %v289 = vadd.f32 0.0, %v288
      %290 = vmatmul.bf16.gmra.mxu0 %v262
      %v291 = vpop.f32.mrf.mxu0
      %v292 = vadd.f32 0.0, %v291
      %v293 = vpop.f32.mrf.mxu0
      %v294 = vadd.f32 0.0, %v293
      %295 = vmatmul.bf16.gmra.mxu0 %v265
      %v296 = vpop.f32.mrf.mxu0
      %v297 = vadd.f32 0.0, %v296
      %v298 = vpop.f32.mrf.mxu0
      %v299 = vadd.f32 0.0, %v298
      %300 = vmatmul.bf16.gmra.mxu0 %v268
      %v301 = vpop.f32.mrf.mxu0
      %v302 = vadd.f32 0.0, %v301
      %v303 = vpop.f32.mrf.mxu0
      %v304 = vadd.f32 0.0, %v303
      %305 = vmatmul.bf16.gmra.mxu0 %v271
      %v306 = vpop.f32.mrf.mxu0
      %v307 = vadd.f32 0.0, %v306
      %v308 = vpop.f32.mrf.mxu0
      %309 = vdwg.mxu0
      %v310 = vpack.c.b16 %v205, %v205
      %v313 = vunpack.c.l.b16 %v181
      %v314 = vunpack.c.l.b16 %v182
      %v315 = vpack.c.b16 %v314, %v313
      %v316 = vsel %vm257, %v207, 0
      %v318 = vsel %vm257, %v208, 0
      %v320 = vsel %vm257, %v209, 0
      %v322 = vsel %vm257, %v210, 0
      %v325 = vsel %vm257, %v310, 0
      %v328 = vsel %vm273, %v315, 0
      %330 = vmatpush.bf16.msra.mxu0 0
      %331 = vmatpush.bf16.msra.mxu0 0
      %332 = vmatpush.bf16.msra.mxu0 0
      %333 = vmatpush.bf16.msra.mxu0 0
      %334 = vmatpush.bf16.msra.mxu0 0
      %335 = vmatpush.bf16.msra.mxu0 0
      %336 = vmatpush.bf16.msra.mxu0 0
      %337 = vmatpush.bf16.msra.mxu0 %v328
      %338 = vmatmul.bf16.gmra.mxu0 %v316
      %v339 = vpop.f32.mrf.mxu0
      %v340 = vadd.f32 %v287, %v339
      %v341 = vpop.f32.mrf.mxu0
      %v342 = vadd.f32 %v289, %v341
      %343 = vmatmul.bf16.gmra.mxu0 %v318
      %v344 = vpop.f32.mrf.mxu0
      %v345 = vadd.f32 %v292, %v344
      %v346 = vpop.f32.mrf.mxu0
      %v347 = vadd.f32 %v294, %v346
      %348 = vmatmul.bf16.gmra.mxu0 %v320
      %v349 = vpop.f32.mrf.mxu0
      %v350 = vadd.f32 %v297, %v349
      %v351 = vpop.f32.mrf.mxu0
      %v352 = vadd.f32 %v299, %v351
      %353 = vmatmul.bf16.gmra.mxu0 %v322
      %v354 = vpop.f32.mrf.mxu0
      %v355 = vadd.f32 %v302, %v354
      %v356 = vpop.f32.mrf.mxu0
      %v357 = vadd.f32 %v304, %v356
      %358 = vmatmul.bf16.gmra.mxu0 %v325
      %v359 = vpop.f32.mrf.mxu0
      %v360 = vadd.f32 %v307, %v359
      %v361 = vpop.f32.mrf.mxu0
      %362 = vdwg.mxu0
      %v363 = vld [vmem:[%s165 + $0x4] sm:$0xf]
      %v364 = vld [vmem:[%s165 + $0x8] sm:$0xf]
      %v365 = vld [vmem:[%s165 + $0xc] sm:$0xf]
      %v366 = vld [vmem:[%s165 + $0x10] sm:$0xf]
      %v367 = vld [vmem:[%s165 + $0x14] sm:$0xf]
      %v368 = vld [vmem:[%s165 + $0x18] sm:$0xf]
      %v369 = vld [vmem:[%s165 + $0x1c] sm:$0xf]
      %v370 = vld [vmem:[%s165 + $0x20] sm:$0xf]
      %v371 = vld [vmem:[%s165 + $0x24] sm:$0xf]
      %v372 = vld [vmem:[%s165 + $0x28] sm:$0x1]
      %s373 = scalar_lea.vmem %s1, 16
      %v374 = vld [vmem:[%s373] sm:$0xf]
      %v375 = vld [vmem:[%s373 + $0x4] sm:$0x3]
      %v386 = vunpack.c.l.b16 %v363
      %v387 = vunpack.c.l.b16 %v364
      %v388 = vunpack.c.l.b16 %v365
      %v389 = vunpack.c.l.b16 %v366
      %v390 = vunpack.c.l.b16 %v367
      %v391 = vunpack.c.l.b16 %v368
      %v392 = vunpack.c.l.b16 %v369
      %v393 = vunpack.c.l.b16 %v370
      %v394 = vunpack.c.l.b16 %v371
      %v395 = vunpack.c.l.b16 %v372
      %v396 = vpack.c.b16 %v387, %v386
      %v397 = vpack.c.b16 %v389, %v388
      %v398 = vpack.c.b16 %v391, %v390
      %v399 = vpack.c.b16 %v393, %v392
      %v400 = vpack.c.b16 %v395, %v394
      %v402 = vshrl.u32 %v396, 16
      %v404 = vshll.u32 %v396, 16
      %v406 = vrot.slane %v404, 1
      %v407 = vor.u32 %v402, %v406
      %v409 = vshll.u32 %v397, 16
      %v411 = vrot.slane %v409, 1
      %v412 = vsel %vm212, %v407, %v411
      %v413 = vshrl.u32 %v397, 16
      %v415 = vor.u32 %v413, %v411
      %v417 = vshll.u32 %v398, 16
      %v419 = vrot.slane %v417, 1
      %v420 = vsel %vm212, %v415, %v419
      %v421 = vshrl.u32 %v398, 16
      %v423 = vor.u32 %v421, %v419
      %v425 = vshll.u32 %v399, 16
      %v427 = vrot.slane %v425, 1
      %v428 = vsel %vm212, %v423, %v427
      %v429 = vshrl.u32 %v399, 16
      %v431 = vor.u32 %v429, %v427
      %v433 = vshll.u32 %v400, 16
      %v435 = vrot.slane %v433, 1
      %v436 = vsel %vm212, %v431, %v435
      %v437 = vshrl.u32 %v400, 16
      %v439 = vor.u32 %v437, %v435
      %v442 = vunpack.c.l.b16 %v374
      %v443 = vunpack.c.l.b16 %v375
      %v444 = vpack.c.b16 %v443, %v442
      %v446 = vsel %vm257, %v412, 0
      %v449 = vsel %vm257, %v420, 0
      %v452 = vsel %vm257, %v428, 0
      %v455 = vsel %vm257, %v436, 0
      %v458 = vsel %vm257, %v439, 0
      %v461 = vsel %vm273, %v444, 0
      %463 = vmatpush.bf16.msra.mxu0 0
      %464 = vmatpush.bf16.msra.mxu0 0
      %465 = vmatpush.bf16.msra.mxu0 0
      %466 = vmatpush.bf16.msra.mxu0 0
      %467 = vmatpush.bf16.msra.mxu0 0
      %468 = vmatpush.bf16.msra.mxu0 0
      %469 = vmatpush.bf16.msra.mxu0 0
      %470 = vmatpush.bf16.msra.mxu0 %v461
      %471 = vmatmul.bf16.gmra.mxu0 %v446
      %v472 = vpop.f32.mrf.mxu0
      %v473 = vadd.f32 0.0, %v472
      %v474 = vpop.f32.mrf.mxu0
      %v475 = vadd.f32 0.0, %v474
      %476 = vmatmul.bf16.gmra.mxu0 %v449
      %v477 = vpop.f32.mrf.mxu0
      %v478 = vadd.f32 0.0, %v477
      %v479 = vpop.f32.mrf.mxu0
      %v480 = vadd.f32 0.0, %v479
      %481 = vmatmul.bf16.gmra.mxu0 %v452
      %v482 = vpop.f32.mrf.mxu0
      %v483 = vadd.f32 0.0, %v482
      %v484 = vpop.f32.mrf.mxu0
      %v485 = vadd.f32 0.0, %v484
      %486 = vmatmul.bf16.gmra.mxu0 %v455
      %v487 = vpop.f32.mrf.mxu0
      %v488 = vadd.f32 0.0, %v487
      %v489 = vpop.f32.mrf.mxu0
      %v490 = vadd.f32 0.0, %v489
      %491 = vmatmul.bf16.gmra.mxu0 %v458
      %v492 = vpop.f32.mrf.mxu0
      %v493 = vadd.f32 0.0, %v492
      %v494 = vpop.f32.mrf.mxu0
      %495 = vdwg.mxu0
      %v496 = vadd.f32 %v340, %v473
      %v497 = vadd.f32 %v342, %v475
      %v498 = vadd.f32 %v345, %v478
      %v499 = vadd.f32 %v347, %v480
      %v500 = vadd.f32 %v350, %v483
      %v501 = vadd.f32 %v352, %v485
      %v502 = vadd.f32 %v355, %v488
      %v503 = vadd.f32 %v357, %v490
      %v504 = vadd.f32 %v360, %v493
      %v505 = vld [vmem:[%s165 + $0x4] sm:$0xe]
      %s506 = scalar_lea.vmem %s1, 24
      %v507 = vld [vmem:[%s506] sm:$0xf]
      %v508 = vld [vmem:[%s506 + $0x4] sm:$0x3]
      %v510 = vunpack.c.l.b16 %v505
      %v511 = vpack.c.b16 %v387, %v510
      %vm512 = vcmask 1046528
      %v513 = vrot.slane %v511, 1
      %v514 = vrot.slane %v397, 1
      %v515 = vsel %vm512, %v513, %v514
      %v516 = vrot.slane %v398, 1
      %v517 = vsel %vm512, %v514, %v516
      %v518 = vrot.slane %v399, 1
      %v519 = vsel %vm512, %v516, %v518
      %v520 = vrot.slane %v400, 1
      %v521 = vsel %vm512, %v518, %v520
      %v524 = vunpack.c.l.b16 %v507
      %v525 = vunpack.c.l.b16 %v508
      %v526 = vpack.c.b16 %v525, %v524
      %v528 = vsel %vm257, %v515, 0
      %v531 = vsel %vm257, %v517, 0
      %v534 = vsel %vm257, %v519, 0
      %v537 = vsel %vm257, %v521, 0
      %v540 = vsel %vm257, %v520, 0
      %v543 = vsel %vm273, %v526, 0
      %545 = vmatpush.bf16.msra.mxu0 0
      %546 = vmatpush.bf16.msra.mxu0 0
      %547 = vmatpush.bf16.msra.mxu0 0
      %548 = vmatpush.bf16.msra.mxu0 0
      %549 = vmatpush.bf16.msra.mxu0 0
      %550 = vmatpush.bf16.msra.mxu0 0
      %551 = vmatpush.bf16.msra.mxu0 0
      %552 = vmatpush.bf16.msra.mxu0 %v543
      %553 = vmatmul.bf16.gmra.mxu0 %v528
      %v554 = vpop.f32.mrf.mxu0
      %v555 = vadd.f32 0.0, %v554
      %v556 = vpop.f32.mrf.mxu0
      %v557 = vadd.f32 0.0, %v556
      %558 = vmatmul.bf16.gmra.mxu0 %v531
      %v559 = vpop.f32.mrf.mxu0
      %v560 = vadd.f32 0.0, %v559
      %v561 = vpop.f32.mrf.mxu0
      %v562 = vadd.f32 0.0, %v561
      %563 = vmatmul.bf16.gmra.mxu0 %v534
      %v564 = vpop.f32.mrf.mxu0
      %v565 = vadd.f32 0.0, %v564
      %v566 = vpop.f32.mrf.mxu0
      %v567 = vadd.f32 0.0, %v566
      %568 = vmatmul.bf16.gmra.mxu0 %v537
      %v569 = vpop.f32.mrf.mxu0
      %v570 = vadd.f32 0.0, %v569
      %v571 = vpop.f32.mrf.mxu0
      %v572 = vadd.f32 0.0, %v571
      %573 = vmatmul.bf16.gmra.mxu0 %v540
      %v574 = vpop.f32.mrf.mxu0
      %v575 = vadd.f32 0.0, %v574
      %v576 = vpop.f32.mrf.mxu0
      %577 = vdwg.mxu0
      %v578 = vadd.f32 %v496, %v555
      %v579 = vadd.f32 %v497, %v557
      %v580 = vadd.f32 %v498, %v560
      %v581 = vadd.f32 %v499, %v562
      %v582 = vadd.f32 %v500, %v565
      %v583 = vadd.f32 %v501, %v567
      %v584 = vadd.f32 %v502, %v570
      %v585 = vadd.f32 %v503, %v572
      %v586 = vadd.f32 %v504, %v575
      %v587 = vld [vmem:[%s2] sm:$0x1]
      %v589 = vperm.slane %v587, 0
      %v591 = vadd.f32 %v578, %v589
      %v592 = vadd.f32 %v579, %v589
      %v593 = vadd.f32 %v580, %v589
      %v594 = vadd.f32 %v581, %v589
      %v595 = vadd.f32 %v582, %v589
      %v596 = vadd.f32 %v583, %v589
      %v597 = vadd.f32 %v584, %v589
      %v598 = vadd.f32 %v585, %v589
      %v599 = vadd.f32 %v586, %v589
      %vm600 = vcmp.ge.f32.partialorder %v591, 0.0
      %vm601 = vcmp.ge.f32.partialorder %v592, 0.0
      %vm602 = vcmp.ge.f32.partialorder %v593, 0.0
      %vm603 = vcmp.ge.f32.partialorder %v594, 0.0
      %vm604 = vcmp.ge.f32.partialorder %v595, 0.0
      %vm605 = vcmp.ge.f32.partialorder %v596, 0.0
      %vm606 = vcmp.ge.f32.partialorder %v597, 0.0
      %vm607 = vcmp.ge.f32.partialorder %v598, 0.0
      %vm608 = vcmp.ge.f32.partialorder %v599, 0.0
      %v609 = vmul.f32 %v591, 0.2
      %v610 = vmul.f32 %v592, 0.2
      %v611 = vmul.f32 %v593, 0.2
      %v612 = vmul.f32 %v594, 0.2
      %v613 = vmul.f32 %v595, 0.2
      %v614 = vmul.f32 %v596, 0.2
      %v615 = vmul.f32 %v597, 0.2
      %v616 = vmul.f32 %v598, 0.2
      %v617 = vmul.f32 %v599, 0.2
      %v618 = vsel %vm600, %v591, %v609
      %v619 = vsel %vm601, %v592, %v610
      %v620 = vsel %vm602, %v593, %v611
      %v621 = vsel %vm603, %v594, %v612
      %v622 = vsel %vm604, %v595, %v613
      %v623 = vsel %vm605, %v596, %v614
      %v624 = vsel %vm606, %v597, %v615
      %v625 = vsel %vm607, %v598, %v616
      %v626 = vsel %vm608, %v599, %v617
      %v627 = vpack.c.bf16 %v618, %v618
      %v628 = vpack.c.bf16 %v619, %v619
      %v629 = vpack.c.bf16 %v620, %v620
      %v630 = vpack.c.bf16 %v621, %v621
      %v631 = vpack.c.bf16 %v622, %v622
      %v632 = vpack.c.bf16 %v623, %v623
      %v633 = vpack.c.bf16 %v624, %v624
      %v634 = vpack.c.bf16 %v625, %v625
      %v635 = vpack.c.bf16 %v626, %v626
      %vm636 = vcmask 519168
      %637 = vst.msk [vmem:[%s170] sm:$0xf] %vm636, %v627
      %638 = vst.msk [vmem:[%s170 + $0x4] sm:$0xf] %vm636, %v628
      %639 = vst.msk [vmem:[%s170 + $0x8] sm:$0xf] %vm636, %v629
      %640 = vst.msk [vmem:[%s170 + $0xc] sm:$0xf] %vm636, %v630
      %641 = vst.msk [vmem:[%s170 + $0x10] sm:$0xf] %vm636, %v631
      %642 = vst.msk [vmem:[%s170 + $0x14] sm:$0xf] %vm636, %v632
      %643 = vst.msk [vmem:[%s170 + $0x18] sm:$0xf] %vm636, %v633
      %644 = vst.msk [vmem:[%s170 + $0x1c] sm:$0xf] %vm636, %v634
      %645 = vst.msk [vmem:[%s170 + $0x20] sm:$0xf] %vm636, %v635
      %p646 = scmp.lt.s32.totalorder %s14, 1
      %s647 = scalar_select %p646, %s14, 1
      %s648 = smul.addr %s647, 9
      %s649 = smul.addr %s648, 4
      %s650 = scalar_lea.vmem %s3, %s649
      // Predicated region
      $region33: #{discriminator_forward.3} parent=31 // pred_check
        %p651 = pneg %p100
      $region34: #{discriminator_forward.3} parent=31 // pred_check_branch
        %653 = sbr.rel (%p651) target = $region36
      $region35: #{discriminator_forward.3} parent=31 // pred_region
        _
      $region36: #{discriminator_forward.3} parent=31 // pred_fallthru
        _
    $region32: #{discriminator_forward.3} parent=5 // pred_fallthru
      _
    %p654 = scmp.le.s32.totalorder 2, %s9
    // Predicated region
    $region37: #{discriminator_forward.3} parent=5 // pred_check
      %p655 = pneg %p654
    $region38: #{discriminator_forward.3} parent=5 // pred_check_branch
      %657 = sbr.rel (%p655) target = $region40
    $region39: #{discriminator_forward.3} parent=5 // pred_region
      %s658 = ssub.s32 %s9, 2
      // Predicated region
      $region41: #{discriminator_forward.3} parent=39 // pred_check
        %p659 = pneg %p106
      $region42: #{discriminator_forward.3} parent=39 // pred_check_branch
        %661 = sbr.rel (%p659) target = $region44
      $region43: #{discriminator_forward.3} parent=39 // pred_region
        %p662 = scmp.lt.s32.totalorder %s15, 1
        %s663 = scalar_select %p662, %s15, 1
        %s664 = smul.addr %s663, 9
        %s665 = smul.addr %s664, 4
        %s666 = scalar_lea.vmem %s3, %s665
      $region44: #{discriminator_forward.3} parent=39 // pred_fallthru
        _
    $region40: #{discriminator_forward.3} parent=5 // pred_fallthru
      _
  $region6: #{discriminator_forward.3} parent=0 // loop_footer
    %s13 = sadd.s32 1, %s9
  $region7: #{discriminator_forward.3} parent=0 // loop_footer_branch
    %8 = sbr.rel target = $region3
  $region8: #{discriminator_forward.3} parent=0 // loop_exit
    _

// kernel: discriminator_forward.5
$region0: #{discriminator_forward.5}
  #allocation0 [shape = 'u32[]', space=smem, size = 0x4, offset = 0x4, fixed_abs, tag = 'smem constant byte address 0x4 - core index']
  #allocation1 [shape = 'u32[72,128]{1,0:T(1,128)}', space=vmem, size = 0x9000, scoped, tag = 'internal scratch']
  #allocation2 [shape = 'f32[1,1]{1,0:T(1,128)S(1)}', space=vmem, size = 0x200, scoped, tag = 'scoped memory for discriminator_forward.5']
  %s0 = inlined_call_operand.vmem [shape: bf16[2,4,5,128], index: 0, kind: input, shape index: {}]
  %s1 = inlined_call_operand.vmem [shape: f32[1,128], index: 1, kind: input, shape index: {}]
  %s2 = inlined_call_operand.vmem [shape: f32[1,128], index: 2, kind: input, shape index: {}]
  %s3 = inlined_call_operand.vmem [shape: f32[16,128], index: 3, kind: input, shape index: {}]
  %s4 = inlined_call_operand.<no memory space> [shape: f32[1,1], index: 4, kind: input, shape index: {}]
  %s5 = inlined_call_operand.vmem [shape: f32[2,1,1], index: 5, kind: output, shape index: {}]
  %s6 = sld [smem:[#allocation0]]
  $region53: #{discriminator_forward.5} parent=0
    _
  %s8 = ssub.s32 1, %s6
  %s9 = scalar_select 0, %s8, %s6
  %v10 = vstv %s4
  %11 = vst [vmem:[#allocation2] sm:$0x1] %v10
  loop: start=0, step=1, limit=4
  $region2: #{discriminator_forward.5} parent=0 // loop_pre_header
    _
  $region3: #{discriminator_forward.5} parent=0 // loop_header
    %s13 = sphi 0, %s17
    %p14 = scmp.ge.s32.totalorder %s13, 4
    %s23 = sphi 0, %s25
    %s26 = sphi 0, %s23
    %s27 = sphi 0, %s26
    %s43 = sphi 0, %s27
    %s47 = sphi 0, %s47
    %s49 = sphi 0, %s47
    %s50 = sphi 0, %s49
    %s64 = sphi 0, %s50
    %s68 = sphi 0, %s68
    %s70 = sphi 0, %s68
    %s71 = sphi 0, %s70
    %s85 = sphi 0, %s71
    %s89 = sphi 0, %s89
    %s91 = sphi 0, %s89
    %s92 = sphi 0, %s91
    %s106 = sphi 0, %s92
    %s110 = sphi 0, %s110
    %s112 = sphi 0, %s110
    %s113 = sphi 0, %s112
    %s127 = sphi 0, %s113
    %s133 = sphi 0, %s135
    %s136 = sphi 0, %s133
    %s137 = sphi 0, %s136
    %s153 = sphi 0, %s137
  $region4: #{discriminator_forward.5} parent=0 // loop_header_branch
    %16 = sbr.rel (%p14) target = $region8
  $region5: #{discriminator_forward.5} parent=0 // loop_body
    %s18 = ssub.s32 %s13, 1
    %s19 = ssub.s32 %s13, 2
    %s20 = sadd.s32 %s13, 1
    %s21 = ssub.s32 %s13, %s20
    %p22 = scmp.eq.s32.totalorder %s21, 0
    %s24 = sadd.s32 %s23, 1
    %s25 = scalar_select %p22, %s23, %s24
    %p28 = pneg %p22
    %p29 = scmp.eq.s32.totalorder %s13, 1
    %p30 = por %p28, %p29
    %p31 = scmp.ne.s32.totalorder %s23, %s26
    %p32 = scmp.eq.s32.totalorder %s13, 0
    %p33 = por %p31, %p32
    %p34 = scmp.ne.s32.totalorder %s23, %s26
    %p35 = scmp.eq.s32.totalorder %s18, 1
    %p36 = por %p34, %p35
    %p37 = scmp.ne.s32.totalorder %s26, %s27
    %p38 = scmp.eq.s32.totalorder %s18, 0
    %p39 = por %p37, %p38
    %p40 = scmp.ne.s32.totalorder %s26, %s27
    %p41 = scmp.eq.s32.totalorder %s19, 1
    %p42 = por %p40, %p41
    %p44 = scmp.ne.s32.totalorder %s27, %s43
    %p45 = scmp.eq.s32.totalorder %s19, 0
    %p46 = por %p44, %p45
    %s48 = sadd.s32 %s47, 1
    %p51 = scmp.eq.s32.totalorder %s13, 1
    %p52 = scmp.ne.s32.totalorder %s47, %s49
    %p53 = scmp.eq.s32.totalorder %s13, 0
    %p54 = por %p52, %p53
    %p55 = scmp.ne.s32.totalorder %s47, %s49
    %p56 = scmp.eq.s32.totalorder %s18, 1
    %p57 = por %p55, %p56
    %p58 = scmp.ne.s32.totalorder %s49, %s50
    %p59 = scmp.eq.s32.totalorder %s18, 0
    %p60 = por %p58, %p59
    %p61 = scmp.ne.s32.totalorder %s49, %s50
    %p62 = scmp.eq.s32.totalorder %s19, 1
    %p63 = por %p61, %p62
    %p65 = scmp.ne.s32.totalorder %s50, %s64
    %p66 = scmp.eq.s32.totalorder %s19, 0
    %p67 = por %p65, %p66
    %s69 = sadd.s32 %s68, 1
    %p72 = scmp.eq.s32.totalorder %s13, 1
    %p73 = scmp.ne.s32.totalorder %s68, %s70
    %p74 = scmp.eq.s32.totalorder %s13, 0
    %p75 = por %p73, %p74
    %p76 = scmp.ne.s32.totalorder %s68, %s70
    %p77 = scmp.eq.s32.totalorder %s18, 1
    %p78 = por %p76, %p77
    %p79 = scmp.ne.s32.totalorder %s70, %s71
    %p80 = scmp.eq.s32.totalorder %s18, 0
    %p81 = por %p79, %p80
    %p82 = scmp.ne.s32.totalorder %s70, %s71
    %p83 = scmp.eq.s32.totalorder %s19, 1
    %p84 = por %p82, %p83
    %p86 = scmp.ne.s32.totalorder %s71, %s85
    %p87 = scmp.eq.s32.totalorder %s19, 0
    %p88 = por %p86, %p87
    %s90 = sadd.s32 %s89, 1
    %p93 = scmp.eq.s32.totalorder %s13, 1
    %p94 = scmp.ne.s32.totalorder %s89, %s91
    %p95 = scmp.eq.s32.totalorder %s13, 0
    %p96 = por %p94, %p95
    %p97 = scmp.ne.s32.totalorder %s89, %s91
    %p98 = scmp.eq.s32.totalorder %s18, 1
    %p99 = por %p97, %p98
    %p100 = scmp.ne.s32.totalorder %s91, %s92
    %p101 = scmp.eq.s32.totalorder %s18, 0
    %p102 = por %p100, %p101
    %p103 = scmp.ne.s32.totalorder %s91, %s92
    %p104 = scmp.eq.s32.totalorder %s19, 1
    %p105 = por %p103, %p104
    %p107 = scmp.ne.s32.totalorder %s92, %s106
    %p108 = scmp.eq.s32.totalorder %s19, 0
    %p109 = por %p107, %p108
    %s111 = sadd.s32 %s110, 1
    %p114 = scmp.eq.s32.totalorder %s13, 1
    %p115 = scmp.ne.s32.totalorder %s110, %s112
    %p116 = scmp.eq.s32.totalorder %s13, 0
    %p117 = por %p115, %p116
    %p118 = scmp.ne.s32.totalorder %s110, %s112
    %p119 = scmp.eq.s32.totalorder %s18, 1
    %p120 = por %p118, %p119
    %p121 = scmp.ne.s32.totalorder %s112, %s113
    %p122 = scmp.eq.s32.totalorder %s18, 0
    %p123 = por %p121, %p122
    %p124 = scmp.ne.s32.totalorder %s112, %s113
    %p125 = scmp.eq.s32.totalorder %s19, 1
    %p126 = por %p124, %p125
    %p128 = scmp.ne.s32.totalorder %s113, %s127
    %p129 = scmp.eq.s32.totalorder %s19, 0
    %p130 = por %p128, %p129
    %s131 = ssub.s32 %s13, %s20
    %p132 = scmp.eq.s32.totalorder %s131, 0
    %s134 = sadd.s32 %s133, 1
    %s135 = scalar_select %p132, %s133, %s134
    %p138 = pneg %p132
    %p139 = scmp.eq.s32.totalorder %s13, 1
    %p140 = por %p138, %p139
    %p141 = scmp.ne.s32.totalorder %s133, %s136
    %p142 = scmp.eq.s32.totalorder %s13, 0
    %p143 = por %p141, %p142
    %p144 = scmp.ne.s32.totalorder %s133, %s136
    %p145 = scmp.eq.s32.totalorder %s18, 1
    %p146 = por %p144, %p145
    %p147 = scmp.ne.s32.totalorder %s136, %s137
    %p148 = scmp.eq.s32.totalorder %s18, 0
    %p149 = por %p147, %p148
    %p150 = scmp.ne.s32.totalorder %s136, %s137
    %p151 = scmp.eq.s32.totalorder %s19, 1
    %p152 = por %p150, %p151
    %p154 = scmp.ne.s32.totalorder %s137, %s153
    %p155 = scmp.eq.s32.totalorder %s19, 0
    %p156 = por %p154, %p155
    %p157 = scmp.le.s32.totalorder 1, %s13
    %p158 = scmp.lt.s32.totalorder %s13, 3
    %p159 = pnand %p157, %p158
    %p160 = pneg %p159
    // Predicated region
    $region9: #{discriminator_forward.5} parent=5 // pred_check
      _
    $region10: #{discriminator_forward.5} parent=5 // pred_check_branch
      %162 = sbr.rel (%p159) target = $region12
    $region11: #{discriminator_forward.5} parent=5 // pred_region
      %s163 = ssub.s32 %s13, 1
      // Predicated region
      $region13: #{discriminator_forward.5} parent=11 // pred_check
        %p164 = pneg %p60
      $region14: #{discriminator_forward.5} parent=11 // pred_check_branch
        %166 = sbr.rel (%p164) target = $region16
      $region15: #{discriminator_forward.5} parent=11 // pred_region
        _
      $region16: #{discriminator_forward.5} parent=11 // pred_fallthru
        _
      // Predicated region
      $region17: #{discriminator_forward.5} parent=11 // pred_check
        %p167 = pneg %p81
      $region18: #{discriminator_forward.5} parent=11 // pred_check_branch
        %169 = sbr.rel (%p167) target = $region20
      $region19: #{discriminator_forward.5} parent=11 // pred_region
        _
      $region20: #{discriminator_forward.5} parent=11 // pred_fallthru
        _
      // Predicated region
      $region21: #{discriminator_forward.5} parent=11 // pred_check
        %p170 = pneg %p102
      $region22: #{discriminator_forward.5} parent=11 // pred_check_branch
        %172 = sbr.rel (%p170) target = $region24
      $region23: #{discriminator_forward.5} parent=11 // pred_region
        _
      $region24: #{discriminator_forward.5} parent=11 // pred_fallthru
        _
      // Predicated region
      $region25: #{discriminator_forward.5} parent=11 // pred_check
        %p173 = pneg %p123
      $region26: #{discriminator_forward.5} parent=11 // pred_check_branch
        %175 = sbr.rel (%p173) target = $region28
      $region27: #{discriminator_forward.5} parent=11 // pred_region
        _
      $region28: #{discriminator_forward.5} parent=11 // pred_fallthru
        _
    $region12: #{discriminator_forward.5} parent=5 // pred_fallthru
      _
    %p176 = scmp.lt.s32.totalorder %s13, 2
    // Predicated region
    $region29: #{discriminator_forward.5} parent=5 // pred_check
      %p177 = pneg %p176
    $region30: #{discriminator_forward.5} parent=5 // pred_check_branch
      %179 = sbr.rel (%p177) target = $region32
    $region31: #{discriminator_forward.5} parent=5 // pred_region
      // Predicated region
      $region33: #{discriminator_forward.5} parent=31 // pred_check
        %p180 = pneg %p33
      $region34: #{discriminator_forward.5} parent=31 // pred_check_branch
        %182 = sbr.rel (%p180) target = $region36
      $region35: #{discriminator_forward.5} parent=31 // pred_region
        %p183 = scmp.lt.s32.totalorder %s13, 1
        %s184 = scalar_select %p183, %s13, 1
        %s185 = smul.addr %s184, 4
        %s186 = smul.addr %s185, 4
        %s187 = scalar_lea.vmem %s0, %s186
      $region36: #{discriminator_forward.5} parent=31 // pred_fallthru
        _
    $region32: #{discriminator_forward.5} parent=5 // pred_fallthru
      _
    %p188 = scmp.le.s32.totalorder 1, %s13
    %p189 = scmp.lt.s32.totalorder %s13, 3
    %p190 = pnand %p188, %p189
    %p191 = pneg %p190
    // Predicated region
    $region37: #{discriminator_forward.5} parent=5 // pred_check
      _
    $region38: #{discriminator_forward.5} parent=5 // pred_check_branch
      %193 = sbr.rel (%p190) target = $region40
    $region39: #{discriminator_forward.5} parent=5 // pred_region
      %s194 = ssub.s32 %s13, 1
      %p195 = scmp.lt.s32.totalorder %s18, 1
      %s196 = scalar_select %p195, %s18, 1
      %s197 = smul.addr %s196, 4
      %s198 = smul.addr %s197, 4
      %s199 = scalar_lea.vmem %s0, %s198
      %p200 = pneg %p39
      %p201 = pneg %p36
      %p202 = pneg %p60
      %p203 = pneg %p57
      %p204 = pneg %p81
      %p205 = pneg %p78
      %p206 = pneg %p102
      %p207 = pneg %p99
      %p208 = pneg %p123
      %p209 = pneg %p120
      %p210 = pneg %p149
      %p211 = pneg %p146
      %p212 = scmp.lt.s32.totalorder %s18, 1
      %s213 = scalar_select %p212, %s18, 1
      %s214 = scalar_lea.vmem %s5, %s213
      %p215 = scmp.lt.s32.totalorder %s18, 1
      %s216 = scalar_select %p215, %s18, 1
      %s217 = smul.addr %s216, 4
      %s218 = smul.addr %s217, 4
      %s219 = scalar_lea.vmem %s0, %s218
      %p220 = scmp.lt.s32.totalorder %s18, 1
      %s221 = scalar_select %p220, %s18, 1
      %s222 = scalar_lea.vmem %s5, %s221
      %v223 = vld [vmem:[%s219] sm:$0x7]
      %v224 = vld [vmem:[%s219 + $0x4] sm:$0x7]
      %v225 = vld [vmem:[%s219 + $0x8] sm:$0x7]
      %v226 = vld [vmem:[%s219 + $0xc] sm:$0x7]
      %v227 = vunpack.c.l.bf16 %v223
      %v228 = vunpack.c.l.bf16 %v224
      %v229 = vunpack.c.l.bf16 %v225
      %v230 = vunpack.c.l.bf16 %v226
      %v231 = vld [vmem:[%s1] sm:$0x1]
      %v233 = vperm.slane %v231, 0
      %v235 = vmul.f32 %v227, %v233
      %v236 = vmul.f32 %v228, %v233
      %v237 = vmul.f32 %v229, %v233
      %v238 = vmul.f32 %v230, %v233
      %v239 = vld [vmem:[%s2] sm:$0x1]
      %v241 = vperm.slane %v239, 0
      %v243 = vadd.f32 %v235, %v241
      %v244 = vadd.f32 %v236, %v241
      %v245 = vadd.f32 %v237, %v241
      %v246 = vadd.f32 %v238, %v241
      %vm247 = vcmp.ge.f32.partialorder %v243, 0.0
      %vm248 = vcmp.ge.f32.partialorder %v244, 0.0
      %vm249 = vcmp.ge.f32.partialorder %v245, 0.0
      %vm250 = vcmp.ge.f32.partialorder %v246, 0.0
      %v251 = vmul.f32 %v243, 0.2
      %v252 = vmul.f32 %v244, 0.2
      %v253 = vmul.f32 %v245, 0.2
      %v254 = vmul.f32 %v246, 0.2
      %v255 = vsel %vm247, %v243, %v251
      %v256 = vsel %vm248, %v244, %v252
      %v257 = vsel %vm249, %v245, %v253
      %v258 = vsel %vm250, %v246, %v254
      %v259 = vld [vmem:[%s3] sm:$0x1]
      %v260 = vmul.f32 %v255, %v259
      %vm261 = vcmask 1040384
      %v262 = vsel %vm261, %v260, 0.0
      %263 = vadd.xlane.f32.xlu0 %v262
      %v264 = vpop.xlane.xlu0 %263
      %v265 = vld [vmem:[%s3 + $0x1] sm:$0x1]
      %v267 = vrot.slane %v265, 7
      %v269 = vmul.f32 %v255, %v267
      %vm270 = vcmask 1041409
      %v271 = vsel %vm270, %v269, 0.0
      %272 = vadd.xlane.f32.xlu0 %v271
      %v273 = vpop.xlane.xlu0 %272
      %v275 = vrot.slane %v273, 1
      %v277 = vadd.f32 %v264, %v275
      %v278 = vld [vmem:[%s3 + $0x2] sm:$0x1]
      %v280 = vrot.slane %v278, 6
      %v282 = vmul.f32 %v255, %v280
      %vm283 = vcmask 1042434
      %v284 = vsel %vm283, %v282, 0.0
      %285 = vadd.xlane.f32.xlu0 %v284
      %v286 = vpop.xlane.xlu0 %285
      %v288 = vrot.slane %v286, 2
      %v290 = vadd.f32 %v277, %v288
      %v291 = vld [vmem:[%s3 + $0x3] sm:$0x1]
      %v293 = vrot.slane %v291, 5
      %v295 = vmul.f32 %v255, %v293
      %vm296 = vcmask 1043459
      %v297 = vsel %vm296, %v295, 0.0
      %298 = vadd.xlane.f32.xlu0 %v297
      %v299 = vpop.xlane.xlu0 %298
      %v301 = vrot.slane %v299, 3
      %v303 = vadd.f32 %v290, %v301
      %v304 = vld [vmem:[%s3 + $0x4] sm:$0x1]
      %v305 = vmul.f32 %v256, %v304
      %v306 = vsel %vm261, %v305, 0.0
      %307 = vadd.xlane.f32.xlu0 %v306
      %v308 = vpop.xlane.xlu0 %307
      %v309 = vadd.f32 %v303, %v308
      %v310 = vld [vmem:[%s3 + $0x5] sm:$0x1]
      %v312 = vrot.slane %v310, 7
      %v314 = vmul.f32 %v256, %v312
      %v315 = vsel %vm270, %v314, 0.0
      %316 = vadd.xlane.f32.xlu0 %v315
      %v317 = vpop.xlane.xlu0 %316
      %v319 = vrot.slane %v317, 1
      %v321 = vadd.f32 %v309, %v319
      %v322 = vld [vmem:[%s3 + $0x6] sm:$0x1]
      %v324 = vrot.slane %v322, 6
      %v326 = vmul.f32 %v256, %v324
      %v327 = vsel %vm283, %v326, 0.0
      %328 = vadd.xlane.f32.xlu0 %v327
      %v329 = vpop.xlane.xlu0 %328
      %v331 = vrot.slane %v329, 2
      %v333 = vadd.f32 %v321, %v331
      %v334 = vld [vmem:[%s3 + $0x7] sm:$0x1]
      %v336 = vrot.slane %v334, 5
      %v338 = vmul.f32 %v256, %v336
      %v339 = vsel %vm296, %v338, 0.0
      %340 = vadd.xlane.f32.xlu0 %v339
      %v341 = vpop.xlane.xlu0 %340
      %v343 = vrot.slane %v341, 3
      %v345 = vadd.f32 %v333, %v343
      %v346 = vld [vmem:[%s3 + $0x8] sm:$0x1]
      %v347 = vmul.f32 %v257, %v346
      %v348 = vsel %vm261, %v347, 0.0
      %349 = vadd.xlane.f32.xlu0 %v348
      %v350 = vpop.xlane.xlu0 %349
      %v351 = vadd.f32 %v345, %v350
      %v352 = vld [vmem:[%s3 + $0x9] sm:$0x1]
      %v354 = vrot.slane %v352, 7
      %v356 = vmul.f32 %v257, %v354
      %v357 = vsel %vm270, %v356, 0.0
      %358 = vadd.xlane.f32.xlu0 %v357
      %v359 = vpop.xlane.xlu0 %358
      %v361 = vrot.slane %v359, 1
      %v363 = vadd.f32 %v351, %v361
      %v364 = vld [vmem:[%s3 + $0xa] sm:$0x1]
      %v366 = vrot.slane %v364, 6
      %v368 = vmul.f32 %v257, %v366
      %v369 = vsel %vm283, %v368, 0.0
      %370 = vadd.xlane.f32.xlu0 %v369
      %v371 = vpop.xlane.xlu0 %370
      %v373 = vrot.slane %v371, 2
      %v375 = vadd.f32 %v363, %v373
      %v376 = vld [vmem:[%s3 + $0xb] sm:$0x1]
      %v378 = vrot.slane %v376, 5
      %v380 = vmul.f32 %v257, %v378
      %v381 = vsel %vm296, %v380, 0.0
      %382 = vadd.xlane.f32.xlu0 %v381
      %v383 = vpop.xlane.xlu0 %382
      %v385 = vrot.slane %v383, 3
      %v387 = vadd.f32 %v375, %v385
      %v388 = vld [vmem:[%s3 + $0xc] sm:$0x1]
      %v389 = vmul.f32 %v258, %v388
      %v390 = vsel %vm261, %v389, 0.0
      %391 = vadd.xlane.f32.xlu0 %v390
      %v392 = vpop.xlane.xlu0 %391
      %v393 = vadd.f32 %v387, %v392
      %v394 = vld [vmem:[%s3 + $0xd] sm:$0x1]
      %v396 = vrot.slane %v394, 7
      %v398 = vmul.f32 %v258, %v396
      %v399 = vsel %vm270, %v398, 0.0
      %400 = vadd.xlane.f32.xlu0 %v399
      %v401 = vpop.xlane.xlu0 %400
      %v403 = vrot.slane %v401, 1
      %v405 = vadd.f32 %v393, %v403
      %v406 = vld [vmem:[%s3 + $0xe] sm:$0x1]
      %v408 = vrot.slane %v406, 6
      %v410 = vmul.f32 %v258, %v408
      %v411 = vsel %vm283, %v410, 0.0
      %412 = vadd.xlane.f32.xlu0 %v411
      %v413 = vpop.xlane.xlu0 %412
      %v415 = vrot.slane %v413, 2
      %v417 = vadd.f32 %v405, %v415
      %v418 = vld [vmem:[%s3 + $0xf] sm:$0x1]
      %v420 = vrot.slane %v418, 5
      %v422 = vmul.f32 %v258, %v420
      %v423 = vsel %vm296, %v422, 0.0
      %424 = vadd.xlane.f32.xlu0 %v423
      %v425 = vpop.xlane.xlu0 %424
      %v427 = vrot.slane %v425, 3
      %v429 = vadd.f32 %v417, %v427
      %v430 = vld [vmem:[#allocation2] sm:$0x1]
      %v431 = vadd.f32 %v429, %v430
      %v432 = vsub.f32 0.0, %v431
      %v433 = vmul.f32 %v432, 1.442695
      %v434 = vpow.pop %v433
      %v435 = vadd.f32 %v434, 1.0
      %v436 = vrcp.pop %v435
      %v437 = vmul.f32 %v435, %v436
      %v438 = vsub.f32 1.0, %v437
      %v439 = vmul.f32 %v436, %v438
      %v440 = vadd.f32 %v436, %v439
      %vm441 = vweird.f32 %v435
      %vm442 = vweird.f32 %v436
      %vm443 = vmor %vm441, %vm442
      %v444 = vsel %vm443, %v436, %v440
      %v445 = vand.u32 2147483647, %v435
      %vm446 = vcmp.eq.f32.partialorder %v445, 8.507059e+37
      %v447 = vand.u32 %v435, 2147483648
      %v448 = vor.u32 1.1754944e-38, %v447
      %v449 = vsel %vm446, %v448, %v444
      %v450 = vmul.f32 1.0, %v449
      %vm451 = vcmask 0
      %452 = vst.msk [vmem:[%s222] sm:$0x1] %vm451, %v450
      %p453 = scmp.lt.s32.totalorder %s18, 1
      %s454 = scalar_select %p453, %s18, 1
      %s455 = scalar_lea.vmem %s5, %s454
      // Predicated region
      $region41: #{discriminator_forward.5} parent=39 // pred_check
        %p456 = pneg %p146
      $region42: #{discriminator_forward.5} parent=39 // pred_check_branch
        %458 = sbr.rel (%p456) target = $region44
      $region43: #{discriminator_forward.5} parent=39 // pred_region
        _
      $region44: #{discriminator_forward.5} parent=39 // pred_fallthru
        _
    $region40: #{discriminator_forward.5} parent=5 // pred_fallthru
      _
    %p459 = scmp.le.s32.totalorder 2, %s13
    // Predicated region
    $region45: #{discriminator_forward.5} parent=5 // pred_check
      %p460 = pneg %p459
    $region46: #{discriminator_forward.5} parent=5 // pred_check_branch
      %462 = sbr.rel (%p460) target = $region48
    $region47: #{discriminator_forward.5} parent=5 // pred_region
      %s463 = ssub.s32 %s13, 2
      // Predicated region
      $region49: #{discriminator_forward.5} parent=47 // pred_check
        %p464 = pneg %p152
      $region50: #{discriminator_forward.5} parent=47 // pred_check_branch
        %466 = sbr.rel (%p464) target = $region52
      $region51: #{discriminator_forward.5} parent=47 // pred_region
        %p467 = scmp.lt.s32.totalorder %s19, 1
        %s468 = scalar_select %p467, %s19, 1
        %s469 = scalar_lea.vmem %s5, %s468
      $region52: #{discriminator_forward.5} parent=47 // pred_fallthru
        _
    $region48: #{discriminator_forward.5} parent=5 // pred_fallthru
      _
  $region6: #{discriminator_forward.5} parent=0 // loop_footer
    %s17 = sadd.s32 1, %s13
  $region7: #{discriminator_forward.5} parent=0 // loop_footer_branch
    %12 = sbr.rel target = $region3
  $region8: #{discriminator_forward.5} parent=0 // loop_exit
    _

// kernel: discriminator_forward.4
$region0: #{discriminator_forward.4}
  #allocation0 [shape = 'u32[]', space=smem, size = 0x4, offset = 0x4, fixed_abs, tag = 'smem constant byte address 0x4 - core index']
  #allocation1 [shape = 'u32[72,128]{1,0:T(1,128)}', space=vmem, size = 0x9000, scoped, tag = 'internal scratch']
  %s0 = inlined_call_operand.vmem [shape: bf16[2,30,256], index: 0, kind: input, shape index: {}]
  %s1 = inlined_call_operand.vmem [shape: bf16[4,256,128], index: 1, kind: input, shape index: {}]
  %s2 = inlined_call_operand.vmem [shape: f32[20,1], index: 2, kind: input, shape index: {}]
  %s3 = inlined_call_operand.vmem [shape: bf16[2,20,128], index: 3, kind: output, shape index: {0}]
  %s4 = inlined_call_operand.vmem [shape: f32[2,1,128], index: 4, kind: output, shape index: {1}]
  %s5 = inlined_call_operand.vmem [shape: f32[2,1,128], index: 5, kind: output, shape index: {2}]
  %6 = xla_tuple %s3, %s4, %s5
  %s7 = sld [smem:[#allocation0]]
  $region61: #{discriminator_forward.4} parent=0
    _
  %s9 = ssub.s32 1, %s7
  %s10 = scalar_select 0, %s9, %s7
  loop: start=0, step=1, limit=4
  $region2: #{discriminator_forward.4} parent=0 // loop_pre_header
    _
  $region3: #{discriminator_forward.4} parent=0 // loop_header
    %s12 = sphi 0, %s16
    %p13 = scmp.ge.s32.totalorder %s12, 4
    %s22 = sphi 0, %s24
    %s25 = sphi 0, %s22
    %s26 = sphi 0, %s25
    %s42 = sphi 0, %s26
    %s46 = sphi 0, %s46
    %s48 = sphi 0, %s46
    %s49 = sphi 0, %s48
    %s63 = sphi 0, %s49
    %s67 = sphi 0, %s67
    %s69 = sphi 0, %s67
    %s70 = sphi 0, %s69
    %s84 = sphi 0, %s70
    %s90 = sphi 0, %s92
    %s93 = sphi 0, %s90
    %s94 = sphi 0, %s93
    %s110 = sphi 0, %s94
    %s116 = sphi 0, %s118
    %s119 = sphi 0, %s116
    %s120 = sphi 0, %s119
    %s136 = sphi 0, %s120
    %s142 = sphi 0, %s144
    %s145 = sphi 0, %s142
    %s146 = sphi 0, %s145
    %s162 = sphi 0, %s146
  $region4: #{discriminator_forward.4} parent=0 // loop_header_branch
    %15 = sbr.rel (%p13) target = $region8
  $region5: #{discriminator_forward.4} parent=0 // loop_body
    %s17 = ssub.s32 %s12, 1
    %s18 = ssub.s32 %s12, 2
    %s19 = sadd.s32 %s12, 1
    %s20 = ssub.s32 %s12, %s19
    %p21 = scmp.eq.s32.totalorder %s20, 0
    %s23 = sadd.s32 %s22, 1
    %s24 = scalar_select %p21, %s22, %s23
    %p27 = pneg %p21
    %p28 = scmp.eq.s32.totalorder %s12, 1
    %p29 = por %p27, %p28
    %p30 = scmp.ne.s32.totalorder %s22, %s25
    %p31 = scmp.eq.s32.totalorder %s12, 0
    %p32 = por %p30, %p31
    %p33 = scmp.ne.s32.totalorder %s22, %s25
    %p34 = scmp.eq.s32.totalorder %s17, 1
    %p35 = por %p33, %p34
    %p36 = scmp.ne.s32.totalorder %s25, %s26
    %p37 = scmp.eq.s32.totalorder %s17, 0
    %p38 = por %p36, %p37
    %p39 = scmp.ne.s32.totalorder %s25, %s26
    %p40 = scmp.eq.s32.totalorder %s18, 1
    %p41 = por %p39, %p40
    %p43 = scmp.ne.s32.totalorder %s26, %s42
    %p44 = scmp.eq.s32.totalorder %s18, 0
    %p45 = por %p43, %p44
    %s47 = sadd.s32 %s46, 1
    %p50 = scmp.eq.s32.totalorder %s12, 1
    %p51 = scmp.ne.s32.totalorder %s46, %s48
    %p52 = scmp.eq.s32.totalorder %s12, 0
    %p53 = por %p51, %p52
    %p54 = scmp.ne.s32.totalorder %s46, %s48
    %p55 = scmp.eq.s32.totalorder %s17, 1
    %p56 = por %p54, %p55
    %p57 = scmp.ne.s32.totalorder %s48, %s49
    %p58 = scmp.eq.s32.totalorder %s17, 0
    %p59 = por %p57, %p58
    %p60 = scmp.ne.s32.totalorder %s48, %s49
    %p61 = scmp.eq.s32.totalorder %s18, 1
    %p62 = por %p60, %p61
    %p64 = scmp.ne.s32.totalorder %s49, %s63
    %p65 = scmp.eq.s32.totalorder %s18, 0
    %p66 = por %p64, %p65
    %s68 = sadd.s32 %s67, 1
    %p71 = scmp.eq.s32.totalorder %s12, 1
    %p72 = scmp.ne.s32.totalorder %s67, %s69
    %p73 = scmp.eq.s32.totalorder %s12, 0
    %p74 = por %p72, %p73
    %p75 = scmp.ne.s32.totalorder %s67, %s69
    %p76 = scmp.eq.s32.totalorder %s17, 1
    %p77 = por %p75, %p76
    %p78 = scmp.ne.s32.totalorder %s69, %s70
    %p79 = scmp.eq.s32.totalorder %s17, 0
    %p80 = por %p78, %p79
    %p81 = scmp.ne.s32.totalorder %s69, %s70
    %p82 = scmp.eq.s32.totalorder %s18, 1
    %p83 = por %p81, %p82
    %p85 = scmp.ne.s32.totalorder %s70, %s84
    %p86 = scmp.eq.s32.totalorder %s18, 0
    %p87 = por %p85, %p86
    %s88 = ssub.s32 %s12, %s19
    %p89 = scmp.eq.s32.totalorder %s88, 0
    %s91 = sadd.s32 %s90, 1
    %s92 = scalar_select %p89, %s90, %s91
    %p95 = pneg %p89
    %p96 = scmp.eq.s32.totalorder %s12, 1
    %p97 = por %p95, %p96
    %p98 = scmp.ne.s32.totalorder %s90, %s93
    %p99 = scmp.eq.s32.totalorder %s12, 0
    %p100 = por %p98, %p99
    %p101 = scmp.ne.s32.totalorder %s90, %s93
    %p102 = scmp.eq.s32.totalorder %s17, 1
    %p103 = por %p101, %p102
    %p104 = scmp.ne.s32.totalorder %s93, %s94
    %p105 = scmp.eq.s32.totalorder %s17, 0
    %p106 = por %p104, %p105
    %p107 = scmp.ne.s32.totalorder %s93, %s94
    %p108 = scmp.eq.s32.totalorder %s18, 1
    %p109 = por %p107, %p108
    %p111 = scmp.ne.s32.totalorder %s94, %s110
    %p112 = scmp.eq.s32.totalorder %s18, 0
    %p113 = por %p111, %p112
    %s114 = ssub.s32 %s12, %s19
    %p115 = scmp.eq.s32.totalorder %s114, 0
    %s117 = sadd.s32 %s116, 1
    %s118 = scalar_select %p115, %s116, %s117
    %p121 = pneg %p115
    %p122 = scmp.eq.s32.totalorder %s12, 1
    %p123 = por %p121, %p122
    %p124 = scmp.ne.s32.totalorder %s116, %s119
    %p125 = scmp.eq.s32.totalorder %s12, 0
    %p126 = por %p124, %p125
    %p127 = scmp.ne.s32.totalorder %s116, %s119
    %p128 = scmp.eq.s32.totalorder %s17, 1
    %p129 = por %p127, %p128
    %p130 = scmp.ne.s32.totalorder %s119, %s120
    %p131 = scmp.eq.s32.totalorder %s17, 0
    %p132 = por %p130, %p131
    %p133 = scmp.ne.s32.totalorder %s119, %s120
    %p134 = scmp.eq.s32.totalorder %s18, 1
    %p135 = por %p133, %p134
    %p137 = scmp.ne.s32.totalorder %s120, %s136
    %p138 = scmp.eq.s32.totalorder %s18, 0
    %p139 = por %p137, %p138
    %s140 = ssub.s32 %s12, %s19
    %p141 = scmp.eq.s32.totalorder %s140, 0
    %s143 = sadd.s32 %s142, 1
    %s144 = scalar_select %p141, %s142, %s143
    %p147 = pneg %p141
    %p148 = scmp.eq.s32.totalorder %s12, 1
    %p149 = por %p147, %p148
    %p150 = scmp.ne.s32.totalorder %s142, %s145
    %p151 = scmp.eq.s32.totalorder %s12, 0
    %p152 = por %p150, %p151
    %p153 = scmp.ne.s32.totalorder %s142, %s145
    %p154 = scmp.eq.s32.totalorder %s17, 1
    %p155 = por %p153, %p154
    %p156 = scmp.ne.s32.totalorder %s145, %s146
    %p157 = scmp.eq.s32.totalorder %s17, 0
    %p158 = por %p156, %p157
    %p159 = scmp.ne.s32.totalorder %s145, %s146
    %p160 = scmp.eq.s32.totalorder %s18, 1
    %p161 = por %p159, %p160
    %p163 = scmp.ne.s32.totalorder %s146, %s162
    %p164 = scmp.eq.s32.totalorder %s18, 0
    %p165 = por %p163, %p164
    %p166 = scmp.le.s32.totalorder 1, %s12
    %p167 = scmp.lt.s32.totalorder %s12, 3
    %p168 = pnand %p166, %p167
    %p169 = pneg %p168
    // Predicated region
    $region9: #{discriminator_forward.4} parent=5 // pred_check
      _
    $region10: #{discriminator_forward.4} parent=5 // pred_check_branch
      %171 = sbr.rel (%p168) target = $region12
    $region11: #{discriminator_forward.4} parent=5 // pred_region
      %s172 = ssub.s32 %s12, 1
      // Predicated region
      $region13: #{discriminator_forward.4} parent=11 // pred_check
        %p173 = pneg %p59
      $region14: #{discriminator_forward.4} parent=11 // pred_check_branch
        %175 = sbr.rel (%p173) target = $region16
      $region15: #{discriminator_forward.4} parent=11 // pred_region
        _
      $region16: #{discriminator_forward.4} parent=11 // pred_fallthru
        _
      // Predicated region
      $region17: #{discriminator_forward.4} parent=11 // pred_check
        %p176 = pneg %p80
      $region18: #{discriminator_forward.4} parent=11 // pred_check_branch
        %178 = sbr.rel (%p176) target = $region20
      $region19: #{discriminator_forward.4} parent=11 // pred_region
        _
      $region20: #{discriminator_forward.4} parent=11 // pred_fallthru
        _
    $region12: #{discriminator_forward.4} parent=5 // pred_fallthru
      _
    %p179 = scmp.lt.s32.totalorder %s12, 2
    // Predicated region
    $region21: #{discriminator_forward.4} parent=5 // pred_check
      %p180 = pneg %p179
    $region22: #{discriminator_forward.4} parent=5 // pred_check_branch
      %182 = sbr.rel (%p180) target = $region24
    $region23: #{discriminator_forward.4} parent=5 // pred_region
      // Predicated region
      $region25: #{discriminator_forward.4} parent=23 // pred_check
        %p183 = pneg %p32
      $region26: #{discriminator_forward.4} parent=23 // pred_check_branch
        %185 = sbr.rel (%p183) target = $region28
      $region27: #{discriminator_forward.4} parent=23 // pred_region
        %p186 = scmp.lt.s32.totalorder %s12, 1
        %s187 = scalar_select %p186, %s12, 1
        %s188 = smul.addr %s187, 8
        %s189 = smul.addr %s188, 4
        %s190 = scalar_lea.vmem %s0, %s189
      $region28: #{discriminator_forward.4} parent=23 // pred_fallthru
        _
    $region24: #{discriminator_forward.4} parent=5 // pred_fallthru
      _
    %p191 = scmp.le.s32.totalorder 1, %s12
    %p192 = scmp.lt.s32.totalorder %s12, 3
    %p193 = pnand %p191, %p192
    %p194 = pneg %p193
    // Predicated region
    $region29: #{discriminator_forward.4} parent=5 // pred_check
      _
    $region30: #{discriminator_forward.4} parent=5 // pred_check_branch
      %196 = sbr.rel (%p193) target = $region32
    $region31: #{discriminator_forward.4} parent=5 // pred_region
      %s197 = ssub.s32 %s12, 1
      %p198 = scmp.lt.s32.totalorder %s17, 1
      %s199 = scalar_select %p198, %s17, 1
      %s200 = smul.addr %s199, 8
      %s201 = smul.addr %s200, 4
      %s202 = scalar_lea.vmem %s0, %s201
      %p203 = pneg %p38
      %p204 = pneg %p35
      %p205 = pneg %p59
      %p206 = pneg %p56
      %p207 = pneg %p80
      %p208 = pneg %p77
      %p209 = pneg %p106
      %p210 = pneg %p103
      %p211 = scmp.lt.s32.totalorder %s17, 1
      %s212 = scalar_select %p211, %s17, 1
      %s213 = smul.addr %s212, 3
      %s214 = smul.addr %s213, 4
      %s215 = scalar_lea.vmem %s3, %s214
      %p216 = pneg %p132
      %p217 = pneg %p129
      %p218 = scmp.lt.s32.totalorder %s17, 1
      %s219 = scalar_select %p218, %s17, 1
      %s220 = scalar_lea.vmem %s4, %s219
      %p221 = pneg %p158
      %p222 = pneg %p155
      %p223 = scmp.lt.s32.totalorder %s17, 1
      %s224 = scalar_select %p223, %s17, 1
      %s225 = scalar_lea.vmem %s5, %s224
      %p226 = scmp.lt.s32.totalorder %s17, 1
      %s227 = scalar_select %p226, %s17, 1
      %s228 = smul.addr %s227, 8
      %s229 = smul.addr %s228, 4
      %s230 = scalar_lea.vmem %s0, %s229
      %p231 = scmp.lt.s32.totalorder %s17, 1
      %s232 = scalar_select %p231, %s17, 1
      %s233 = smul.addr %s232, 3
      %s234 = smul.addr %s233, 4
      %s235 = scalar_lea.vmem %s3, %s234
      %p236 = scmp.lt.s32.totalorder %s17, 1
      %s237 = scalar_select %p236, %s17, 1
      %s238 = scalar_lea.vmem %s4, %s237
      %p239 = scmp.lt.s32.totalorder %s17, 1
      %s240 = scalar_select %p239, %s17, 1
      %s241 = scalar_lea.vmem %s5, %s240
      %v242 = vld [vmem:[%s230] sm:$0xff]
      %v243 = vld [vmem:[%s230 + $0x8] sm:$0xff]
      %v244 = vld [vmem:[%s230 + $0x10] sm:$0x33]
      %v245 = vld [vmem:[%s1] sm:$0xf]
      %v246 = vld [vmem:[%s1 + $0x4] sm:$0xf]
      %v247 = vld [vmem:[%s1 + $0x8] sm:$0xf]
      %v248 = vld [vmem:[%s1 + $0xc] sm:$0xf]
      %v249 = vld [vmem:[%s1 + $0x10] sm:$0xf]
      %v250 = vld [vmem:[%s1 + $0x14] sm:$0xf]
      %v251 = vld [vmem:[%s1 + $0x18] sm:$0xf]
      %v252 = vld [vmem:[%s1 + $0x1c] sm:$0xf]
      %v253 = vld [vmem:[%s1 + $0x20] sm:$0xf]
      %v254 = vld [vmem:[%s1 + $0x24] sm:$0xf]
      %v255 = vld [vmem:[%s1 + $0x28] sm:$0xf]
      %v256 = vld [vmem:[%s1 + $0x2c] sm:$0xf]
      %v257 = vld [vmem:[%s1 + $0x30] sm:$0xf]
      %v258 = vld [vmem:[%s1 + $0x34] sm:$0xf]
      %v259 = vld [vmem:[%s1 + $0x38] sm:$0xf]
      %v260 = vld [vmem:[%s1 + $0x3c] sm:$0xf]
      %v261 = vld [vmem:[%s1 + $0x40] sm:$0xf]
      %v262 = vld [vmem:[%s1 + $0x44] sm:$0xf]
      %v263 = vld [vmem:[%s1 + $0x48] sm:$0xf]
      %v264 = vld [vmem:[%s1 + $0x4c] sm:$0xf]
      %v265 = vld [vmem:[%s1 + $0x50] sm:$0xf]
      %v266 = vld [vmem:[%s1 + $0x54] sm:$0xf]
      %v267 = vld [vmem:[%s1 + $0x58] sm:$0xf]
      %v268 = vld [vmem:[%s1 + $0x5c] sm:$0xf]
      %v269 = vld [vmem:[%s1 + $0x60] sm:$0xf]
      %v270 = vld [vmem:[%s1 + $0x64] sm:$0xf]
      %v271 = vld [vmem:[%s1 + $0x68] sm:$0xf]
      %v272 = vld [vmem:[%s1 + $0x6c] sm:$0xf]
      %v273 = vld [vmem:[%s1 + $0x70] sm:$0xf]
      %v274 = vld [vmem:[%s1 + $0x74] sm:$0xf]
      %v275 = vld [vmem:[%s1 + $0x78] sm:$0xf]
      %v276 = vld [vmem:[%s1 + $0x7c] sm:$0xf]
      %v277 = vld [vmem:[%s230 + $0x10] sm:$0x77]
      %s278 = scalar_lea.vmem %s1, 128
      %v279 = vld [vmem:[%s278] sm:$0xf]
      %v280 = vld [vmem:[%s278 + $0x4] sm:$0xf]
      %v281 = vld [vmem:[%s278 + $0x8] sm:$0xf]
      %v282 = vld [vmem:[%s278 + $0xc] sm:$0xf]
      %v283 = vld [vmem:[%s278 + $0x10] sm:$0xf]
      %v284 = vld [vmem:[%s278 + $0x14] sm:$0xf]
      %v285 = vld [vmem:[%s278 + $0x18] sm:$0xf]
      %v286 = vld [vmem:[%s278 + $0x1c] sm:$0xf]
      %v287 = vld [vmem:[%s278 + $0x20] sm:$0xf]
      %v288 = vld [vmem:[%s278 + $0x24] sm:$0xf]
      %v289 = vld [vmem:[%s278 + $0x28] sm:$0xf]
      %v290 = vld [vmem:[%s278 + $0x2c] sm:$0xf]
      %v291 = vld [vmem:[%s278 + $0x30] sm:$0xf]
      %v292 = vld [vmem:[%s278 + $0x34] sm:$0xf]
      %v293 = vld [vmem:[%s278 + $0x38] sm:$0xf]
      %v294 = vld [vmem:[%s278 + $0x3c] sm:$0xf]
      %v295 = vld [vmem:[%s278 + $0x40] sm:$0xf]
      %v296 = vld [vmem:[%s278 + $0x44] sm:$0xf]
      %v297 = vld [vmem:[%s278 + $0x48] sm:$0xf]
      %v298 = vld [vmem:[%s278 + $0x4c] sm:$0xf]
      %v299 = vld [vmem:[%s278 + $0x50] sm:$0xf]
      %v300 = vld [vmem:[%s278 + $0x54] sm:$0xf]
      %v301 = vld [vmem:[%s278 + $0x58] sm:$0xf]
      %v302 = vld [vmem:[%s278 + $0x5c] sm:$0xf]
      %v303 = vld [vmem:[%s278 + $0x60] sm:$0xf]
      %v304 = vld [vmem:[%s278 + $0x64] sm:$0xf]
      %v305 = vld [vmem:[%s278 + $0x68] sm:$0xf]
      %v306 = vld [vmem:[%s278 + $0x6c] sm:$0xf]
      %v307 = vld [vmem:[%s278 + $0x70] sm:$0xf]
      %v308 = vld [vmem:[%s278 + $0x74] sm:$0xf]
      %v309 = vld [vmem:[%s278 + $0x78] sm:$0xf]
      %v310 = vld [vmem:[%s278 + $0x7c] sm:$0xf]
      %v314 = vunpack.c.l.b16 %v242
      %v315 = vunpack.c.h.b16 %v242
      %v316 = vunpack.c.l.b16 %v243
      %v317 = vunpack.c.h.b16 %v243
      %v318 = vunpack.c.l.b16 %v277
      %v319 = vunpack.c.h.b16 %v277
      %v320 = vpack.c.b16 %v316, %v314
      %v321 = vpack.c.b16 %v317, %v315
      %v322 = vpack.c.b16 %v318, %v318
      %v323 = vpack.c.b16 %v319, %v319
      %vm324 = vsmask.f32 7424
      %v326 = vshrl.u32 %v320, 16
      %v328 = vshll.u32 %v320, 16
      %v330 = vrot.slane %v328, 1
      %v331 = vor.u32 %v326, %v330
      %v333 = vshll.u32 %v322, 16
      %v335 = vrot.slane %v333, 1
      %v336 = vsel %vm324, %v331, %v335
      %v338 = vshrl.u32 %v321, 16
      %v340 = vshll.u32 %v321, 16
      %v342 = vrot.slane %v340, 1
      %v343 = vor.u32 %v338, %v342
      %v345 = vshll.u32 %v323, 16
      %v347 = vrot.slane %v345, 1
      %v348 = vsel %vm324, %v343, %v347
      %v349 = vshrl.u32 %v322, 16
      %v351 = vor.u32 %v349, %v335
      %v352 = vshrl.u32 %v323, 16
      %v354 = vor.u32 %v352, %v347
      %v391 = vunpack.c.l.b16 %v279
      %v392 = vunpack.c.l.b16 %v280
      %v393 = vunpack.c.l.b16 %v281
      %v394 = vunpack.c.l.b16 %v282
      %v395 = vunpack.c.l.b16 %v283
      %v396 = vunpack.c.l.b16 %v284
      %v397 = vunpack.c.l.b16 %v285
      %v398 = vunpack.c.l.b16 %v286
      %v399 = vunpack.c.l.b16 %v287
      %v400 = vunpack.c.l.b16 %v288
      %v401 = vunpack.c.l.b16 %v289
      %v402 = vunpack.c.l.b16 %v290
      %v403 = vunpack.c.l.b16 %v291
      %v404 = vunpack.c.l.b16 %v292
      %v405 = vunpack.c.l.b16 %v293
      %v406 = vunpack.c.l.b16 %v294
      %v407 = vunpack.c.l.b16 %v295
      %v408 = vunpack.c.l.b16 %v296
      %v409 = vunpack.c.l.b16 %v297
      %v410 = vunpack.c.l.b16 %v298
      %v411 = vunpack.c.l.b16 %v299
      %v412 = vunpack.c.l.b16 %v300
      %v413 = vunpack.c.l.b16 %v301
      %v414 = vunpack.c.l.b16 %v302
      %v415 = vunpack.c.l.b16 %v303
      %v416 = vunpack.c.l.b16 %v304
      %v417 = vunpack.c.l.b16 %v305
      %v418 = vunpack.c.l.b16 %v306
      %v419 = vunpack.c.l.b16 %v307
      %v420 = vunpack.c.l.b16 %v308
      %v421 = vunpack.c.l.b16 %v309
      %v422 = vunpack.c.l.b16 %v310
      %v423 = vpack.c.b16 %v392, %v391
      %v424 = vpack.c.b16 %v394, %v393
      %v425 = vpack.c.b16 %v396, %v395
      %v426 = vpack.c.b16 %v398, %v397
      %v427 = vpack.c.b16 %v400, %v399
      %v428 = vpack.c.b16 %v402, %v401
      %v429 = vpack.c.b16 %v404, %v403
      %v430 = vpack.c.b16 %v406, %v405
      %v431 = vpack.c.b16 %v408, %v407
      %v432 = vpack.c.b16 %v410, %v409
      %v433 = vpack.c.b16 %v412, %v411
      %v434 = vpack.c.b16 %v414, %v413
      %v435 = vpack.c.b16 %v416, %v415
      %v436 = vpack.c.b16 %v418, %v417
      %v437 = vpack.c.b16 %v420, %v419
      %v438 = vpack.c.b16 %v422, %v421
      %455 = vmatpush.bf16.msra.mxu0 %v430
      %456 = vmatpush.bf16.msra.mxu0 %v429
      %457 = vmatpush.bf16.msra.mxu0 %v428
      %458 = vmatpush.bf16.msra.mxu0 %v427
      %459 = vmatpush.bf16.msra.mxu0 %v426
      %460 = vmatpush.bf16.msra.mxu0 %v425
      %461 = vmatpush.bf16.msra.mxu0 %v424
      %462 = vmatpush.bf16.msra.mxu0 %v423
      %463 = vmatmul.bf16.gmra.mxu0 %v336
      %v464 = vpop.f32.mrf.mxu0
      %v465 = vadd.f32 0.0, %v464
      %v466 = vpop.f32.mrf.mxu0
      %v467 = vadd.f32 0.0, %v466
      %468 = vmatmul.bf16.gmra.mxu0 %v351
      %v469 = vpop.f32.mrf.mxu0
      %v470 = vadd.f32 0.0, %v469
      %v471 = vpop.f32.mrf.mxu0
      %472 = vdwg.mxu0
      %473 = vmatpush.bf16.msra.mxu0 %v438
      %474 = vmatpush.bf16.msra.mxu0 %v437
      %475 = vmatpush.bf16.msra.mxu0 %v436
      %476 = vmatpush.bf16.msra.mxu0 %v435
      %477 = vmatpush.bf16.msra.mxu0 %v434
      %478 = vmatpush.bf16.msra.mxu0 %v433
      %479 = vmatpush.bf16.msra.mxu0 %v432
      %480 = vmatpush.bf16.msra.mxu0 %v431
      %481 = vmatmul.bf16.gmra.mxu0 %v348
      %v482 = vpop.f32.mrf.mxu0
      %v483 = vadd.f32 %v465, %v482
      %v484 = vpop.f32.mrf.mxu0
      %v485 = vadd.f32 %v467, %v484
      %486 = vmatmul.bf16.gmra.mxu0 %v354
      %v487 = vpop.f32.mrf.mxu0
      %v488 = vadd.f32 %v470, %v487
      %v489 = vpop.f32.mrf.mxu0
      %490 = vdwg.mxu0
      %v492 = vunpack.c.l.b16 %v244
      %v493 = vunpack.c.h.b16 %v244
      %v494 = vpack.c.b16 %v492, %v492
      %v495 = vpack.c.b16 %v493, %v493
      %v532 = vunpack.c.l.b16 %v245
      %v533 = vunpack.c.l.b16 %v246
      %v534 = vunpack.c.l.b16 %v247
      %v535 = vunpack.c.l.b16 %v248
      %v536 = vunpack.c.l.b16 %v249
      %v537 = vunpack.c.l.b16 %v250
      %v538 = vunpack.c.l.b16 %v251
      %v539 = vunpack.c.l.b16 %v252
      %v540 = vunpack.c.l.b16 %v253
      %v541 = vunpack.c.l.b16 %v254
      %v542 = vunpack.c.l.b16 %v255
      %v543 = vunpack.c.l.b16 %v256
      %v544 = vunpack.c.l.b16 %v257
      %v545 = vunpack.c.l.b16 %v258
      %v546 = vunpack.c.l.b16 %v259
      %v547 = vunpack.c.l.b16 %v260
      %v548 = vunpack.c.l.b16 %v261
      %v549 = vunpack.c.l.b16 %v262
      %v550 = vunpack.c.l.b16 %v263
      %v551 = vunpack.c.l.b16 %v264
      %v552 = vunpack.c.l.b16 %v265
      %v553 = vunpack.c.l.b16 %v266
      %v554 = vunpack.c.l.b16 %v267
      %v555 = vunpack.c.l.b16 %v268
      %v556 = vunpack.c.l.b16 %v269
      %v557 = vunpack.c.l.b16 %v270
      %v558 = vunpack.c.l.b16 %v271
      %v559 = vunpack.c.l.b16 %v272
      %v560 = vunpack.c.l.b16 %v273
      %v561 = vunpack.c.l.b16 %v274
      %v562 = vunpack.c.l.b16 %v275
      %v563 = vunpack.c.l.b16 %v276
      %v564 = vpack.c.b16 %v533, %v532
      %v565 = vpack.c.b16 %v535, %v534
      %v566 = vpack.c.b16 %v537, %v536
      %v567 = vpack.c.b16 %v539, %v538
      %v568 = vpack.c.b16 %v541, %v540
      %v569 = vpack.c.b16 %v543, %v542
      %v570 = vpack.c.b16 %v545, %v544
      %v571 = vpack.c.b16 %v547, %v546
      %v572 = vpack.c.b16 %v549, %v548
      %v573 = vpack.c.b16 %v551, %v550
      %v574 = vpack.c.b16 %v553, %v552
      %v575 = vpack.c.b16 %v555, %v554
      %v576 = vpack.c.b16 %v557, %v556
      %v577 = vpack.c.b16 %v559, %v558
      %v578 = vpack.c.b16 %v561, %v560
      %v579 = vpack.c.b16 %v563, %v562
      %596 = vmatpush.bf16.msra.mxu0 %v571
      %597 = vmatpush.bf16.msra.mxu0 %v570
      %598 = vmatpush.bf16.msra.mxu0 %v569
      %599 = vmatpush.bf16.msra.mxu0 %v568
      %600 = vmatpush.bf16.msra.mxu0 %v567
      %601 = vmatpush.bf16.msra.mxu0 %v566
      %602 = vmatpush.bf16.msra.mxu0 %v565
      %603 = vmatpush.bf16.msra.mxu0 %v564
      %604 = vmatmul.bf16.gmra.mxu0 %v320
      %v605 = vpop.f32.mrf.mxu0
      %v606 = vadd.f32 %v483, %v605
      %v607 = vpop.f32.mrf.mxu0
      %v608 = vadd.f32 %v485, %v607
      %609 = vmatmul.bf16.gmra.mxu0 %v494
      %v610 = vpop.f32.mrf.mxu0
      %v611 = vadd.f32 %v488, %v610
      %v612 = vpop.f32.mrf.mxu0
      %613 = vdwg.mxu0
      %614 = vmatpush.bf16.msra.mxu0 %v579
      %615 = vmatpush.bf16.msra.mxu0 %v578
      %616 = vmatpush.bf16.msra.mxu0 %v577
      %617 = vmatpush.bf16.msra.mxu0 %v576
      %618 = vmatpush.bf16.msra.mxu0 %v575
      %619 = vmatpush.bf16.msra.mxu0 %v574
      %620 = vmatpush.bf16.msra.mxu0 %v573
      %621 = vmatpush.bf16.msra.mxu0 %v572
      %622 = vmatmul.bf16.gmra.mxu0 %v321
      %v623 = vpop.f32.mrf.mxu0
      %v624 = vadd.f32 %v606, %v623
      %v625 = vpop.f32.mrf.mxu0
      %v626 = vadd.f32 %v608, %v625
      %627 = vmatmul.bf16.gmra.mxu0 %v495
      %v628 = vpop.f32.mrf.mxu0
      %v629 = vadd.f32 %v611, %v628
      %v630 = vpop.f32.mrf.mxu0
      %631 = vdwg.mxu0
      %v632 = vld [vmem:[%s230] sm:$0xcc]
      %v633 = vld [vmem:[%s230 + $0x8] sm:$0xff]
      %v634 = vld [vmem:[%s230 + $0x10] sm:$0xff]
      %v635 = vld [vmem:[%s230 + $0x18] sm:$0x11]
      %s636 = scalar_lea.vmem %s1, 256
      %v637 = vld [vmem:[%s636] sm:$0xf]
      %v638 = vld [vmem:[%s636 + $0x4] sm:$0xf]
      %v639 = vld [vmem:[%s636 + $0x8] sm:$0xf]
      %v640 = vld [vmem:[%s636 + $0xc] sm:$0xf]
      %v641 = vld [vmem:[%s636 + $0x10] sm:$0xf]
      %v642 = vld [vmem:[%s636 + $0x14] sm:$0xf]
      %v643 = vld [vmem:[%s636 + $0x18] sm:$0xf]
      %v644 = vld [vmem:[%s636 + $0x1c] sm:$0xf]
      %v645 = vld [vmem:[%s636 + $0x20] sm:$0xf]
      %v646 = vld [vmem:[%s636 + $0x24] sm:$0xf]
      %v647 = vld [vmem:[%s636 + $0x28] sm:$0xf]
      %v648 = vld [vmem:[%s636 + $0x2c] sm:$0xf]
      %v649 = vld [vmem:[%s636 + $0x30] sm:$0xf]
      %v650 = vld [vmem:[%s636 + $0x34] sm:$0xf]
      %v651 = vld [vmem:[%s636 + $0x38] sm:$0xf]
      %v652 = vld [vmem:[%s636 + $0x3c] sm:$0xf]
      %v653 = vld [vmem:[%s636 + $0x40] sm:$0xf]
      %v654 = vld [vmem:[%s636 + $0x44] sm:$0xf]
      %v655 = vld [vmem:[%s636 + $0x48] sm:$0xf]
      %v656 = vld [vmem:[%s636 + $0x4c] sm:$0xf]
      %v657 = vld [vmem:[%s636 + $0x50] sm:$0xf]
      %v658 = vld [vmem:[%s636 + $0x54] sm:$0xf]
      %v659 = vld [vmem:[%s636 + $0x58] sm:$0xf]
      %v660 = vld [vmem:[%s636 + $0x5c] sm:$0xf]
      %v661 = vld [vmem:[%s636 + $0x60] sm:$0xf]
      %v662 = vld [vmem:[%s636 + $0x64] sm:$0xf]
      %v663 = vld [vmem:[%s636 + $0x68] sm:$0xf]
      %v664 = vld [vmem:[%s636 + $0x6c] sm:$0xf]
      %v665 = vld [vmem:[%s636 + $0x70] sm:$0xf]
      %v666 = vld [vmem:[%s636 + $0x74] sm:$0xf]
      %v667 = vld [vmem:[%s636 + $0x78] sm:$0xf]
      %v668 = vld [vmem:[%s636 + $0x7c] sm:$0xf]
      %v673 = vunpack.c.l.b16 %v632
      %v674 = vunpack.c.h.b16 %v632
      %v675 = vunpack.c.l.b16 %v633
      %v676 = vunpack.c.h.b16 %v633
      %v677 = vunpack.c.l.b16 %v634
      %v678 = vunpack.c.h.b16 %v634
      %v679 = vunpack.c.l.b16 %v635
      %v680 = vunpack.c.h.b16 %v635
      %v681 = vpack.c.b16 %v675, %v673
      %v682 = vpack.c.b16 %v676, %v674
      %v683 = vpack.c.b16 %v679, %v677
      %v684 = vpack.c.b16 %v680, %v678
      %vm685 = vsmask.f32 5376
      %v687 = vshrl.u32 %v681, 16
      %v689 = vrot.slane %v687, 2
      %v690 = vshll.u32 %v681, 16
      %v692 = vrot.slane %v690, 3
      %v693 = vor.u32 %v689, %v692
      %v695 = vshrl.u32 %v683, 16
      %v697 = vrot.slane %v695, 2
      %v698 = vshll.u32 %v683, 16
      %v700 = vrot.slane %v698, 3
      %v701 = vor.u32 %v697, %v700
      %v702 = vsel %vm685, %v693, %v701
      %v704 = vshrl.u32 %v682, 16
      %v706 = vrot.slane %v704, 2
      %v707 = vshll.u32 %v682, 16
      %v709 = vrot.slane %v707, 3
      %v710 = vor.u32 %v706, %v709
      %v712 = vshrl.u32 %v684, 16
      %v714 = vrot.slane %v712, 2
      %v715 = vshll.u32 %v684, 16
      %v717 = vrot.slane %v715, 3
      %v718 = vor.u32 %v714, %v717
      %v719 = vsel %vm685, %v710, %v718
      %v756 = vunpack.c.l.b16 %v637
      %v757 = vunpack.c.l.b16 %v638
      %v758 = vunpack.c.l.b16 %v639
      %v759 = vunpack.c.l.b16 %v640
      %v760 = vunpack.c.l.b16 %v641
      %v761 = vunpack.c.l.b16 %v642
      %v762 = vunpack.c.l.b16 %v643
      %v763 = vunpack.c.l.b16 %v644
      %v764 = vunpack.c.l.b16 %v645
      %v765 = vunpack.c.l.b16 %v646
      %v766 = vunpack.c.l.b16 %v647
      %v767 = vunpack.c.l.b16 %v648
      %v768 = vunpack.c.l.b16 %v649
      %v769 = vunpack.c.l.b16 %v650
      %v770 = vunpack.c.l.b16 %v651
      %v771 = vunpack.c.l.b16 %v652
      %v772 = vunpack.c.l.b16 %v653
      %v773 = vunpack.c.l.b16 %v654
      %v774 = vunpack.c.l.b16 %v655
      %v775 = vunpack.c.l.b16 %v656
      %v776 = vunpack.c.l.b16 %v657
      %v777 = vunpack.c.l.b16 %v658
      %v778 = vunpack.c.l.b16 %v659
      %v779 = vunpack.c.l.b16 %v660
      %v780 = vunpack.c.l.b16 %v661
      %v781 = vunpack.c.l.b16 %v662
      %v782 = vunpack.c.l.b16 %v663
      %v783 = vunpack.c.l.b16 %v664
      %v784 = vunpack.c.l.b16 %v665
      %v785 = vunpack.c.l.b16 %v666
      %v786 = vunpack.c.l.b16 %v667
      %v787 = vunpack.c.l.b16 %v668
      %v788 = vpack.c.b16 %v757, %v756
      %v789 = vpack.c.b16 %v759, %v758
      %v790 = vpack.c.b16 %v761, %v760
      %v791 = vpack.c.b16 %v763, %v762
      %v792 = vpack.c.b16 %v765, %v764
      %v793 = vpack.c.b16 %v767, %v766
      %v794 = vpack.c.b16 %v769, %v768
      %v795 = vpack.c.b16 %v771, %v770
      %v796 = vpack.c.b16 %v773, %v772
      %v797 = vpack.c.b16 %v775, %v774
      %v798 = vpack.c.b16 %v777, %v776
      %v799 = vpack.c.b16 %v779, %v778
      %v800 = vpack.c.b16 %v781, %v780
      %v801 = vpack.c.b16 %v783, %v782
      %v802 = vpack.c.b16 %v785, %v784
      %v803 = vpack.c.b16 %v787, %v786
      %820 = vmatpush.bf16.msra.mxu0 %v795
      %821 = vmatpush.bf16.msra.mxu0 %v794
      %822 = vmatpush.bf16.msra.mxu0 %v793
      %823 = vmatpush.bf16.msra.mxu0 %v792
      %824 = vmatpush.bf16.msra.mxu0 %v791
      %825 = vmatpush.bf16.msra.mxu0 %v790
      %826 = vmatpush.bf16.msra.mxu0 %v789
      %827 = vmatpush.bf16.msra.mxu0 %v788
      %828 = vmatmul.bf16.gmra.mxu0 %v702
      %v829 = vpop.f32.mrf.mxu0
      %v830 = vadd.f32 0.0, %v829
      %v831 = vpop.f32.mrf.mxu0
      %v832 = vadd.f32 0.0, %v831
      %833 = vmatmul.bf16.gmra.mxu0 %v701
      %v834 = vpop.f32.mrf.mxu0
      %v835 = vadd.f32 0.0, %v834
      %v836 = vpop.f32.mrf.mxu0
      %837 = vdwg.mxu0
      %838 = vmatpush.bf16.msra.mxu0 %v803
      %839 = vmatpush.bf16.msra.mxu0 %v802
      %840 = vmatpush.bf16.msra.mxu0 %v801
      %841 = vmatpush.bf16.msra.mxu0 %v800
      %842 = vmatpush.bf16.msra.mxu0 %v799
      %843 = vmatpush.bf16.msra.mxu0 %v798
      %844 = vmatpush.bf16.msra.mxu0 %v797
      %845 = vmatpush.bf16.msra.mxu0 %v796
      %846 = vmatmul.bf16.gmra.mxu0 %v719
      %v847 = vpop.f32.mrf.mxu0
      %v848 = vadd.f32 %v830, %v847
      %v849 = vpop.f32.mrf.mxu0
      %v850 = vadd.f32 %v832, %v849
      %851 = vmatmul.bf16.gmra.mxu0 %v718
      %v852 = vpop.f32.mrf.mxu0
      %v853 = vadd.f32 %v835, %v852
      %v854 = vpop.f32.mrf.mxu0
      %855 = vdwg.mxu0
      %v856 = vadd.f32 %v624, %v848
      %v857 = vadd.f32 %v626, %v850
      %v858 = vadd.f32 %v629, %v853
      %v859 = vld [vmem:[%s230] sm:$0x88]
      %s860 = scalar_lea.vmem %s1, 384
      %v861 = vld [vmem:[%s860] sm:$0xf]
      %v862 = vld [vmem:[%s860 + $0x4] sm:$0xf]
      %v863 = vld [vmem:[%s860 + $0x8] sm:$0xf]
      %v864 = vld [vmem:[%s860 + $0xc] sm:$0xf]
      %v865 = vld [vmem:[%s860 + $0x10] sm:$0xf]
      %v866 = vld [vmem:[%s860 + $0x14] sm:$0xf]
      %v867 = vld [vmem:[%s860 + $0x18] sm:$0xf]
      %v868 = vld [vmem:[%s860 + $0x1c] sm:$0xf]
      %v869 = vld [vmem:[%s860 + $0x20] sm:$0xf]
      %v870 = vld [vmem:[%s860 + $0x24] sm:$0xf]
      %v871 = vld [vmem:[%s860 + $0x28] sm:$0xf]
      %v872 = vld [vmem:[%s860 + $0x2c] sm:$0xf]
      %v873 = vld [vmem:[%s860 + $0x30] sm:$0xf]
      %v874 = vld [vmem:[%s860 + $0x34] sm:$0xf]
      %v875 = vld [vmem:[%s860 + $0x38] sm:$0xf]
      %v876 = vld [vmem:[%s860 + $0x3c] sm:$0xf]
      %v877 = vld [vmem:[%s860 + $0x40] sm:$0xf]
      %v878 = vld [vmem:[%s860 + $0x44] sm:$0xf]
      %v879 = vld [vmem:[%s860 + $0x48] sm:$0xf]
      %v880 = vld [vmem:[%s860 + $0x4c] sm:$0xf]
      %v881 = vld [vmem:[%s860 + $0x50] sm:$0xf]
      %v882 = vld [vmem:[%s860 + $0x54] sm:$0xf]
      %v883 = vld [vmem:[%s860 + $0x58] sm:$0xf]
      %v884 = vld [vmem:[%s860 + $0x5c] sm:$0xf]
      %v885 = vld [vmem:[%s860 + $0x60] sm:$0xf]
      %v886 = vld [vmem:[%s860 + $0x64] sm:$0xf]
      %v887 = vld [vmem:[%s860 + $0x68] sm:$0xf]
      %v888 = vld [vmem:[%s860 + $0x6c] sm:$0xf]
      %v889 = vld [vmem:[%s860 + $0x70] sm:$0xf]
      %v890 = vld [vmem:[%s860 + $0x74] sm:$0xf]
      %v891 = vld [vmem:[%s860 + $0x78] sm:$0xf]
      %v892 = vld [vmem:[%s860 + $0x7c] sm:$0xf]
      %v894 = vunpack.c.l.b16 %v859
      %v895 = vunpack.c.h.b16 %v859
      %v896 = vpack.c.b16 %v675, %v894
      %v897 = vpack.c.b16 %v676, %v895
      %vm898 = vcmask 1044480
      %v899 = vrot.slane %v896, 3
      %v900 = vrot.slane %v683, 3
      %v901 = vsel %vm898, %v899, %v900
      %v902 = vrot.slane %v897, 3
      %v903 = vrot.slane %v684, 3
      %v904 = vsel %vm898, %v902, %v903
      %v941 = vunpack.c.l.b16 %v861
      %v942 = vunpack.c.l.b16 %v862
      %v943 = vunpack.c.l.b16 %v863
      %v944 = vunpack.c.l.b16 %v864
      %v945 = vunpack.c.l.b16 %v865
      %v946 = vunpack.c.l.b16 %v866
      %v947 = vunpack.c.l.b16 %v867
      %v948 = vunpack.c.l.b16 %v868
      %v949 = vunpack.c.l.b16 %v869
      %v950 = vunpack.c.l.b16 %v870
      %v951 = vunpack.c.l.b16 %v871
      %v952 = vunpack.c.l.b16 %v872
      %v953 = vunpack.c.l.b16 %v873
      %v954 = vunpack.c.l.b16 %v874
      %v955 = vunpack.c.l.b16 %v875
      %v956 = vunpack.c.l.b16 %v876
      %v957 = vunpack.c.l.b16 %v877
      %v958 = vunpack.c.l.b16 %v878
      %v959 = vunpack.c.l.b16 %v879
      %v960 = vunpack.c.l.b16 %v880
      %v961 = vunpack.c.l.b16 %v881
      %v962 = vunpack.c.l.b16 %v882
      %v963 = vunpack.c.l.b16 %v883
      %v964 = vunpack.c.l.b16 %v884
      %v965 = vunpack.c.l.b16 %v885
      %v966 = vunpack.c.l.b16 %v886
      %v967 = vunpack.c.l.b16 %v887
      %v968 = vunpack.c.l.b16 %v888
      %v969 = vunpack.c.l.b16 %v889
      %v970 = vunpack.c.l.b16 %v890
      %v971 = vunpack.c.l.b16 %v891
      %v972 = vunpack.c.l.b16 %v892
      %v973 = vpack.c.b16 %v942, %v941
      %v974 = vpack.c.b16 %v944, %v943
      %v975 = vpack.c.b16 %v946, %v945
      %v976 = vpack.c.b16 %v948, %v947
      %v977 = vpack.c.b16 %v950, %v949
      %v978 = vpack.c.b16 %v952, %v951
      %v979 = vpack.c.b16 %v954, %v953
      %v980 = vpack.c.b16 %v956, %v955
      %v981 = vpack.c.b16 %v958, %v957
      %v982 = vpack.c.b16 %v960, %v959
      %v983 = vpack.c.b16 %v962, %v961
      %v984 = vpack.c.b16 %v964, %v963
      %v985 = vpack.c.b16 %v966, %v965
      %v986 = vpack.c.b16 %v968, %v967
      %v987 = vpack.c.b16 %v970, %v969
      %v988 = vpack.c.b16 %v972, %v971
      %1005 = vmatpush.bf16.msra.mxu0 %v980
      %1006 = vmatpush.bf16.msra.mxu0 %v979
      %1007 = vmatpush.bf16.msra.mxu0 %v978
      %1008 = vmatpush.bf16.msra.mxu0 %v977
      %1009 = vmatpush.bf16.msra.mxu0 %v976
      %1010 = vmatpush.bf16.msra.mxu0 %v975
      %1011 = vmatpush.bf16.msra.mxu0 %v974
      %1012 = vmatpush.bf16.msra.mxu0 %v973
      %1013 = vmatmul.bf16.gmra.mxu0 %v901
      %v1014 = vpop.f32.mrf.mxu0
      %v1015 = vadd.f32 0.0, %v1014
      %v1016 = vpop.f32.mrf.mxu0
      %v1017 = vadd.f32 0.0, %v1016
      %1018 = vmatmul.bf16.gmra.mxu0 %v900
      %v1019 = vpop.f32.mrf.mxu0
      %v1020 = vadd.f32 0.0, %v1019
      %v1021 = vpop.f32.mrf.mxu0
      %1022 = vdwg.mxu0
      %1023 = vmatpush.bf16.msra.mxu0 %v988
      %1024 = vmatpush.bf16.msra.mxu0 %v987
      %1025 = vmatpush.bf16.msra.mxu0 %v986
      %1026 = vmatpush.bf16.msra.mxu0 %v985
      %1027 = vmatpush.bf16.msra.mxu0 %v984
      %1028 = vmatpush.bf16.msra.mxu0 %v983
      %1029 = vmatpush.bf16.msra.mxu0 %v982
      %1030 = vmatpush.bf16.msra.mxu0 %v981
      %1031 = vmatmul.bf16.gmra.mxu0 %v904
      %v1032 = vpop.f32.mrf.mxu0
      %v1033 = vadd.f32 %v1015, %v1032
      %v1034 = vpop.f32.mrf.mxu0
      %v1035 = vadd.f32 %v1017, %v1034
      %1036 = vmatmul.bf16.gmra.mxu0 %v903
      %v1037 = vpop.f32.mrf.mxu0
      %v1038 = vadd.f32 %v1020, %v1037
      %v1039 = vpop.f32.mrf.mxu0
      %1040 = vdwg.mxu0
      %v1041 = vadd.f32 %v856, %v1033
      %v1042 = vadd.f32 %v857, %v1035
      %v1043 = vadd.f32 %v858, %v1038
      %v1044 = vld [vmem:[%s2] sm:$0xff]
      %v1045 = vld [vmem:[%s2 + $0x8] sm:$0xff]
      %v1046 = vld [vmem:[%s2 + $0x10] sm:$0xf]
      %1048 = vset.pattern.permute.xlu0 0
      %1049 = vperm.xlu0 %1048, %v1044
      %v1050 = vpop.permute.xlu0 %1049
      %1053 = vset.pattern.permute.xlu0 0
      %1054 = vperm.xlu0 %1053, %v1045
      %v1055 = vpop.permute.xlu0 %1054
      %1058 = vset.pattern.permute.xlu0 0
      %1059 = vperm.xlu0 %1058, %v1046
      %v1060 = vpop.permute.xlu0 %1059
      %v1062 = vmul.f32 %v1041, %v1050
      %v1063 = vmul.f32 %v1042, %v1055
      %v1064 = vmul.f32 %v1043, %v1060
      %v1065 = vadd.f32 %v1062, %v1063
      %vm1066 = vcmask 1043456
      %v1067 = vsel %vm1066, %v1064, 0.0
      %v1068 = vadd.f32 %v1065, %v1067
      %v1069 = vrot.slane %v1068, 4
      %v1070 = vadd.f32 %v1068, %v1069
      %v1071 = vrot.slane %v1070, 2
      %v1072 = vadd.f32 %v1070, %v1071
      %v1073 = vrot.slane %v1072, 1
      %v1074 = vadd.f32 %v1072, %v1073
      %1075 = vst [vmem:[%s238] sm:$0x1] %v1074
      %v1076 = vmul.f32 %v1041, %v1041
      %v1077 = vmul.f32 %v1042, %v1042
      %v1078 = vmul.f32 %v1043, %v1043
      %v1079 = vmul.f32 %v1076, %v1050
      %v1080 = vmul.f32 %v1077, %v1055
      %v1081 = vmul.f32 %v1078, %v1060
      %v1082 = vadd.f32 %v1079, %v1080
      %v1083 = vsel %vm1066, %v1081, 0.0
      %v1084 = vadd.f32 %v1082, %v1083
      %v1085 = vrot.slane %v1084, 4
      %v1086 = vadd.f32 %v1084, %v1085
      %v1087 = vrot.slane %v1086, 2
      %v1088 = vadd.f32 %v1086, %v1087
      %v1089 = vrot.slane %v1088, 1
      %v1090 = vadd.f32 %v1088, %v1089
      %1091 = vst [vmem:[%s241] sm:$0x1] %v1090
      %v1092 = vpack.c.bf16 %v1041, %v1041
      %v1093 = vpack.c.bf16 %v1042, %v1042
      %v1094 = vpack.c.bf16 %v1043, %v1043
      %1095 = vst [vmem:[%s235] sm:$0xf] %v1092
      %1096 = vst [vmem:[%s235 + $0x4] sm:$0xf] %v1093
      %1097 = vst [vmem:[%s235 + $0x8] sm:$0x3] %v1094
      %p1098 = scmp.lt.s32.totalorder %s17, 1
      %s1099 = scalar_select %p1098, %s17, 1
      %s1100 = smul.addr %s1099, 3
      %s1101 = smul.addr %s1100, 4
      %s1102 = scalar_lea.vmem %s3, %s1101
      %p1103 = scmp.lt.s32.totalorder %s17, 1
      %s1104 = scalar_select %p1103, %s17, 1
      %s1105 = scalar_lea.vmem %s4, %s1104
      %p1106 = scmp.lt.s32.totalorder %s17, 1
      %s1107 = scalar_select %p1106, %s17, 1
      %s1108 = scalar_lea.vmem %s5, %s1107
      // Predicated region
      $region33: #{discriminator_forward.4} parent=31 // pred_check
        %p1109 = pneg %p103
      $region34: #{discriminator_forward.4} parent=31 // pred_check_branch
        %1111 = sbr.rel (%p1109) target = $region36
      $region35: #{discriminator_forward.4} parent=31 // pred_region
        _
      $region36: #{discriminator_forward.4} parent=31 // pred_fallthru
        _
      // Predicated region
      $region37: #{discriminator_forward.4} parent=31 // pred_check
        %p1112 = pneg %p129
      $region38: #{discriminator_forward.4} parent=31 // pred_check_branch
        %1114 = sbr.rel (%p1112) target = $region40
      $region39: #{discriminator_forward.4} parent=31 // pred_region
        _
      $region40: #{discriminator_forward.4} parent=31 // pred_fallthru
        _
      // Predicated region
      $region41: #{discriminator_forward.4} parent=31 // pred_check
        %p1115 = pneg %p155
      $region42: #{discriminator_forward.4} parent=31 // pred_check_branch
        %1117 = sbr.rel (%p1115) target = $region44
      $region43: #{discriminator_forward.4} parent=31 // pred_region
        _
      $region44: #{discriminator_forward.4} parent=31 // pred_fallthru
        _
    $region32: #{discriminator_forward.4} parent=5 // pred_fallthru
      _
    %p1118 = scmp.le.s32.totalorder 2, %s12
    // Predicated region
    $region45: #{discriminator_forward.4} parent=5 // pred_check
      %p1119 = pneg %p1118
    $region46: #{discriminator_forward.4} parent=5 // pred_check_branch
      %1121 = sbr.rel (%p1119) target = $region48
    $region47: #{discriminator_forward.4} parent=5 // pred_region
      %s1122 = ssub.s32 %s12, 2
      // Predicated region
      $region49: #{discriminator_forward.4} parent=47 // pred_check
        %p1123 = pneg %p109
      $region50: #{discriminator_forward.4} parent=47 // pred_check_branch
        %1125 = sbr.rel (%p1123) target = $region52
      $region51: #{discriminator_forward.4} parent=47 // pred_region
        %p1126 = scmp.lt.s32.totalorder %s18, 1
        %s1127 = scalar_select %p1126, %s18, 1
        %s1128 = smul.addr %s1127, 3
        %s1129 = smul.addr %s1128, 4
        %s1130 = scalar_lea.vmem %s3, %s1129
      $region52: #{discriminator_forward.4} parent=47 // pred_fallthru
        _
      // Predicated region
      $region53: #{discriminator_forward.4} parent=47 // pred_check
        %p1131 = pneg %p135
      $region54: #{discriminator_forward.4} parent=47 // pred_check_branch
        %1133 = sbr.rel (%p1131) target = $region56
      $region55: #{discriminator_forward.4} parent=47 // pred_region
        %p1134 = scmp.lt.s32.totalorder %s18, 1
        %s1135 = scalar_select %p1134, %s18, 1
        %s1136 = scalar_lea.vmem %s4, %s1135
      $region56: #{discriminator_forward.4} parent=47 // pred_fallthru
        _
      // Predicated region
      $region57: #{discriminator_forward.4} parent=47 // pred_check
        %p1137 = pneg %p161
      $region58: #{discriminator_forward.4} parent=47 // pred_check_branch
        %1139 = sbr.rel (%p1137) target = $region60
      $region59: #{discriminator_forward.4} parent=47 // pred_region
        %p1140 = scmp.lt.s32.totalorder %s18, 1
        %s1141 = scalar_select %p1140, %s18, 1
        %s1142 = scalar_lea.vmem %s5, %s1141
      $region60: #{discriminator_forward.4} parent=47 // pred_fallthru
        _
    $region48: #{discriminator_forward.4} parent=5 // pred_fallthru
      _
  $region6: #{discriminator_forward.4} parent=0 // loop_footer
    %s16 = sadd.s32 1, %s12
  $region7: #{discriminator_forward.4} parent=0 // loop_footer_branch
    %11 = sbr.rel target = $region3
  $region8: #{discriminator_forward.4} parent=0 // loop_exit
    _

</llo_original>
